<compile_context>
chip_gen: v6e
topology: v6e:2x2x1
jax: 0.10.0
libtpu: 0.0.40
codegen_flags: <defaults>
</compile_context>

<pallas_src>
import functools

import jax
import jax.numpy as jnp
import numpy as np
from jax.experimental import pallas as pl
from jax.experimental.pallas import tpu as pltpu

KH = KW = 5     # conv kernel size
BLK1 = 256      # lanes per kh tap in conv1 Toeplitz (24 widths * 8 ch used)
BLK2 = 128      # lanes per kh tap in conv2 Toeplitz ( 8 widths * 16 ch used)
TB = 8          # images per grid step (batch tile)


# ----------------------------------------------------------------------------
# Fused Pallas kernel: conv1+pool1 -> conv2+pool2 -> 3-layer MLP (TB images).
# ----------------------------------------------------------------------------
def cnn_fused_kernel(x_ref, t1_ref, b1_ref, t2_ref, b2_ref,
                     w1_ref, c1_ref, w2_ref, c2_ref, w3_ref, c3_ref, o_ref):
    # x_ref : (1, 28*TB, 28*Cin)  rows = (h%4)*7*TB + (h//4)*TB + b_local
    # t1_ref: (28*Cin, 5*256) bf16   conv1 banded weights, rows = ci*28 + w
    # b1_ref: (1, 96) f32            conv1 bias tiled over pooled width
    # t2_ref: (96, 5*128) bf16       conv2 banded weights, rows = w2*8 + ci
    # b2_ref: (1, 64) f32            conv2 bias tiled over pooled width
    # w*/c* : FC weights (bf16) / biases (f32), zero-padded to 128 lanes
    # o_ref : (TB, 128) f32          padded logits for this batch tile
    tb = o_ref.shape[0]
    f32 = jnp.float32

    # ---- conv1 width-convolution: one GEMM for all height classes/images ---
    lhs1 = x_ref[0].astype(jnp.bfloat16)                        # (28*TB, 28*Cin)
    u1 = jnp.dot(lhs1, t1_ref[...], preferred_element_type=f32)  # (28*TB, 1280)

    def reduce_h(umat, n_cls, in_rows, out_rows, blk, p):
        # Sum kh taps for conv output rows with (oh mod n_cls == p).
        # umat row layout: cls*in_rows*TB + row_in_cls*TB + b_local.
        acc = None
        for kh in range(KH):
            cls, m = (p + kh) % n_cls, (p + kh) // n_cls
            start = (cls * in_rows + m) * tb                    # TB-aligned
            term = umat[start:start + out_rows * tb, kh * blk:(kh + 1) * blk]
            acc = term if acc is None else acc + term
        return acc                                              # (out_rows*TB, blk)

    def pool(a, b, half, width):
        # 2x2 max-pool: width pairs live at lane offsets {0, half}; height
        # pairs are the two parity arrays a/b (rows already aligned).
        return jnp.maximum(jnp.maximum(a[:, :width], a[:, half:half + width]),
                           jnp.maximum(b[:, :width], b[:, half:half + width]))

    # ---- conv1 height reduction + 2x2 max-pool + bias + ReLU ---------------
    r1 = [reduce_h(u1, 4, 7, 6, BLK1, p) for p in range(4)]     # each (6*TB, 256)
    b1 = b1_ref[...]
    z_e = jnp.maximum(pool(r1[0], r1[1], 128, 96) + b1, 0.0)    # (6*TB, 96)
    z_o = jnp.maximum(pool(r1[2], r1[3], 128, 96) + b1, 0.0)    # (6*TB, 96)
    # lane layout of z_*: w2*8 + ci   (12 pooled widths x 8 channels)

    # ---- conv2 width-convolution: both height parities in one GEMM ---------
    lhs2 = jnp.concatenate([z_e, z_o], axis=0).astype(jnp.bfloat16)  # (12*TB, 96)
    u2 = jnp.dot(lhs2, t2_ref[...], preferred_element_type=f32)      # (12*TB, 640)

    # ---- conv2 height reduction + 2x2 max-pool + bias + ReLU ---------------
    r2 = [reduce_h(u2, 2, 6, 4, BLK2, r) for r in range(2)]     # each (4*TB, 128)
    z2 = jnp.maximum(pool(r2[0], r2[1], 64, 64) + b2_ref[...], 0.0)  # (4*TB, 64)
    # z2[u*TB + b, s2*16 + co] = feature map at (h=u, w=s2, channel=co)

    # ---- MLP: FC(256->128)+ReLU -> FC(128->64p)+ReLU -> FC(64p->out_p) -----
    h = None
    for u in range(4):                                          # contract flatten dim
        part = jnp.dot(z2[u * tb:(u + 1) * tb, :].astype(jnp.bfloat16),
                       w1_ref[u * 64:(u + 1) * 64, :],
                       preferred_element_type=f32)              # (TB, 128)
        h = part if h is None else h + part
    h = jnp.maximum(h + c1_ref[...], 0.0)
    h = jnp.maximum(jnp.dot(h.astype(jnp.bfloat16), w2_ref[...],
                            preferred_element_type=f32) + c2_ref[...], 0.0)
    out = jnp.dot(h.astype(jnp.bfloat16), w3_ref[...],
                  preferred_element_type=f32) + c3_ref[...]
    o_ref[...] = out.astype(o_ref.dtype)


# ----------------------------------------------------------------------------
# Weight preprocessing (one-time, host side): banded conv matrices, tiled
# biases, FC permutation + zero padding to 128 lanes, bf16 MXU operands.
# ----------------------------------------------------------------------------
def _conv_toeplitz(w, in_w, row_order, blk):
    """w: (KH, KW, Cin, Cout). Returns (in_w*Cin, KH*blk) banded matrix.

    Column layout:  kh*blk + (ow % 2)*(blk//2) + (ow // 2)*Cout + co
    Row layout:     "cw" -> ci*in_w + w_pos     (conv1: channel-major lanes)
                    "wc" -> w_pos*Cin + ci      (conv2: width-major lanes)
    """
    kh_, kw_, cin, cout = w.shape
    out_w = in_w - kw_ + 1
    half = blk // 2
    assert out_w % 2 == 0 and (out_w // 2) * cout <= half
    t = np.zeros((in_w * cin, kh_ * blk), np.float32)
    for kh in range(kh_):
        for ow in range(out_w):
            col = kh * blk + (ow % 2) * half + (ow // 2) * cout
            for kw in range(kw_):
                wpos = ow + kw
                for ci in range(cin):
                    row = ci * in_w + wpos if row_order == "cw" else wpos * cin + ci
                    t[row, col:col + cout] = w[kh, kw, ci, :]
    return t


def prepare_params(p, out_dim):
    w1 = np.asarray(p["conv1_w"], np.float32)              # (5,5,Cin,8)
    b1 = np.asarray(p["conv1_b"], np.float32).reshape(-1)  # (8,)
    w2 = np.asarray(p["conv2_w"], np.float32)              # (5,5,8,16)
    b2 = np.asarray(p["conv2_b"], np.float32).reshape(-1)  # (16,)

    t1 = _conv_toeplitz(w1, in_w=28, row_order="cw", blk=BLK1)   # (28*Cin, 1280)
    t2 = _conv_toeplitz(w2, in_w=12, row_order="wc", blk=BLK2)   # (96, 640)
    b1t = np.tile(b1, 12)[None, :]                          # (1, 96)
    b2t = np.tile(b2, 4)[None, :]                           # (1, 64)

    # FC1 row permutation: kernel flatten order (h, w, c) -> torch (c, h, w).
    perm = np.empty(256, np.int32)
    for u in range(4):
        for s in range(4):
            for c in range(16):
                perm[u * 64 + s * 16 + c] = c * 16 + u * 4 + s
    fc1_w = np.asarray(p["fc1_w"], np.float32)[perm, :]     # (256, 128)
    fc1_b = np.asarray(p["fc1_b"], np.float32).reshape(1, 128)

    fc2_w = np.zeros((128, 128), np.float32)
    fc2_w[:, :64] = np.asarray(p["fc2_w"], np.float32)
    fc2_b = np.zeros((1, 128), np.float32)
    fc2_b[0, :64] = np.asarray(p["fc2_b"], np.float32).reshape(-1)

    fc3_w = np.zeros((128, 128), np.float32)
    fc3_w[:64, :out_dim] = np.asarray(p["fc3_w"], np.float32)
    fc3_b = np.zeros((1, 128), np.float32)
    fc3_b[0, :out_dim] = np.asarray(p["fc3_b"], np.float32).reshape(-1)

    bf = jnp.bfloat16
    return dict(
        t1=jnp.asarray(t1, bf), b1t=jnp.asarray(b1t),
        t2=jnp.asarray(t2, bf), b2t=jnp.asarray(b2t),
        fc1_w=jnp.asarray(fc1_w, bf), fc1_b=jnp.asarray(fc1_b),
        fc2_w=jnp.asarray(fc2_w, bf), fc2_b=jnp.asarray(fc2_b),
        fc3_w=jnp.asarray(fc3_w, bf), fc3_b=jnp.asarray(fc3_b))


# ----------------------------------------------------------------------------
# Wrapper: one fused pallas_call, grid over batch tiles of TB images.
# ----------------------------------------------------------------------------
def cnn_forward(x_nchw, kp, out_dim, tb=TB):
    B, Cin, H, W = x_nchw.shape
    assert (H, W) == (28, 28), "this CNN is defined for 28x28 inputs"
    Bp = ((B + tb - 1) // tb) * tb
    if Bp != B:
        x_nchw = jnp.pad(x_nchw, ((0, Bp - B), (0, 0), (0, 0), (0, 0)))
    nt = Bp // tb

    # One-off host-side layout: per tile, rows are ordered
    # (h%4, h//4, image) and lanes are (ci, w) -> the conv1 GEMM LHS directly.
    x_r = x_nchw.reshape(nt, tb, Cin, 7, 4, 28)
    x_prep = jnp.transpose(x_r, (0, 4, 3, 1, 2, 5)).reshape(nt, 28 * tb, Cin * 28)

    def full(arr):
        nd = arr.ndim
        return pl.BlockSpec(arr.shape, lambda t, _n=nd: (0,) * _n)

    out_full = pl.pallas_call(
        cnn_fused_kernel,
        out_shape=jax.ShapeDtypeStruct((Bp, 128), jnp.float32),
        grid_spec=pltpu.PrefetchScalarGridSpec(
            num_scalar_prefetch=0,
            grid=(nt,),
            in_specs=[
                pl.BlockSpec((1, 28 * tb, Cin * 28), lambda t: (t, 0, 0)),
                full(kp["t1"]), full(kp["b1t"]),
                full(kp["t2"]), full(kp["b2t"]),
                full(kp["fc1_w"]), full(kp["fc1_b"]),
                full(kp["fc2_w"]), full(kp["fc2_b"]),
                full(kp["fc3_w"]), full(kp["fc3_b"]),
            ],
            out_specs=pl.BlockSpec((tb, 128), lambda t: (t, 0)),
        ),
        compiler_params=pltpu.CompilerParams(
            dimension_semantics=("parallel",)),
    )(x_prep, kp["t1"], kp["b1t"], kp["t2"], kp["b2t"],
      kp["fc1_w"], kp["fc1_b"], kp["fc2_w"], kp["fc2_b"],
      kp["fc3_w"], kp["fc3_b"])
    return out_full[:B, :out_dim]


# ----------------------------------------------------------------------------
# Deterministic parameter init (torch-semantics shapes, synthetic values)
# ----------------------------------------------------------------------------
def init_params(in_ch, out_dim, key):
    ks = jax.random.split(key, 10)
    nrm = lambda k, s, sc: jax.random.normal(k, s, jnp.float32) * sc
    return {
        "conv1_w": nrm(ks[0], (5, 5, in_ch, 8), 0.1),
        "conv1_b": nrm(ks[1], (1, 8), 0.1),
        "conv2_w": nrm(ks[2], (5, 5, 8, 16), 0.05),
        "conv2_b": nrm(ks[3], (1, 16), 0.05),
        "fc1_w": nrm(ks[4], (16 * 4 * 4, 128), 0.05),
        "fc1_b": nrm(ks[5], (1, 128), 0.05),
        "fc2_w": nrm(ks[6], (128, 64), 0.05),
        "fc2_b": nrm(ks[7], (1, 64), 0.05),
        "fc3_w": nrm(ks[8], (64, out_dim), 0.05),
        "fc3_b": nrm(ks[9], (1, out_dim), 0.05),
    }


# ----------------------------------------------------------------------------
# Pure-JAX reference (PyTorch semantics) for the correctness check
# ----------------------------------------------------------------------------
def ref_forward(x_nchw, p):
    hi = jax.lax.Precision.HIGHEST

    def conv_block(x, w_hwio, b):
        w_oihw = jnp.transpose(w_hwio, (3, 2, 0, 1))
        y = jax.lax.conv_general_dilated(
            x, w_oihw, (1, 1), "VALID",
            dimension_numbers=("NCHW", "OIHW", "NCHW"), precision=hi)
        y = jnp.maximum(y + b.reshape(1, -1, 1, 1), 0.0)
        return jax.lax.reduce_window(y, -jnp.inf, jax.lax.max,
                                     (1, 1, 2, 2), (1, 1, 2, 2), "VALID")

    y = conv_block(x_nchw, p["conv1_w"], p["conv1_b"])
    y = conv_block(y, p["conv2_w"], p["conv2_b"])
    flat = y.reshape(x_nchw.shape[0], -1)
    h = jnp.maximum(jnp.dot(flat, p["fc1_w"], precision=hi) + p["fc1_b"], 0.0)
    h = jnp.maximum(jnp.dot(h, p["fc2_w"], precision=hi) + p["fc2_b"], 0.0)
    return jnp.dot(h, p["fc3_w"], precision=hi) + p["fc3_b"]


# ----------------------------------------------------------------------------
if __name__ == "__main__":
    key = jax.random.PRNGKey(0)
    k_x, k_p = jax.random.split(key)

    batch, in_ch, out_dim = 16, 1, 10     # grid = (2,) -> both v7x TCs busy
    x = jax.random.normal(k_x, (batch, in_ch, 28, 28), jnp.float32)
    params = init_params(in_ch, out_dim, k_p)
    kparams = prepare_params(params, out_dim)

    fwd = jax.jit(functools.partial(cnn_forward, out_dim=out_dim))
    out = jax.block_until_ready(fwd(x, kparams))
    assert out.shape == (batch, out_dim), out.shape

    ref = jax.block_until_ready(ref_forward(x, params))
    # bf16 MXU operands with f32 accumulation -> slightly looser tolerance.
    if not np.allclose(np.asarray(out), np.asarray(ref), atol=2e-2, rtol=2e-2):
        raise AssertionError("Pallas CNN output mismatch vs. JAX reference")

    print("KERNEL_OK")
</pallas_src>

<mosaic_0001>
module attributes {stable_mosaic.version = 11 : i64} {
  func.func @cnn_fused_kernel(%arg0: i32, %arg1: memref<1x224x28xf32, #tpu.memory_space<vmem>>, %arg2: memref<28x1280xbf16, #tpu.memory_space<vmem>>, %arg3: memref<1x96xf32, #tpu.memory_space<vmem>>, %arg4: memref<96x640xbf16, #tpu.memory_space<vmem>>, %arg5: memref<1x64xf32, #tpu.memory_space<vmem>>, %arg6: memref<256x128xbf16, #tpu.memory_space<vmem>>, %arg7: memref<1x128xf32, #tpu.memory_space<vmem>>, %arg8: memref<128x128xbf16, #tpu.memory_space<vmem>>, %arg9: memref<1x128xf32, #tpu.memory_space<vmem>>, %arg10: memref<128x128xbf16, #tpu.memory_space<vmem>>, %arg11: memref<1x128xf32, #tpu.memory_space<vmem>>, %arg12: memref<8x128xf32, #tpu.memory_space<vmem>>) attributes {dimension_semantics = [#tpu.dimension_semantics<parallel>], iteration_bounds = array<i64: 2>, scalar_prefetch = 0 : i64, scratch_operands = 0 : i64, tpu.core_type = #tpu.core_type<tc>, window_params = [{transform_indices = @transform_0, window_bounds = array<i64: 1, 224, 28>}, {pipeline_mode = #tpu.pipeline_mode<synchronous>, transform_indices = @transform_1, window_bounds = array<i64: 28, 1280>}, {pipeline_mode = #tpu.pipeline_mode<synchronous>, transform_indices = @transform_2, window_bounds = array<i64: 1, 96>}, {pipeline_mode = #tpu.pipeline_mode<synchronous>, transform_indices = @transform_3, window_bounds = array<i64: 96, 640>}, {pipeline_mode = #tpu.pipeline_mode<synchronous>, transform_indices = @transform_4, window_bounds = array<i64: 1, 64>}, {pipeline_mode = #tpu.pipeline_mode<synchronous>, transform_indices = @transform_5, window_bounds = array<i64: 256, 128>}, {pipeline_mode = #tpu.pipeline_mode<synchronous>, transform_indices = @transform_6, window_bounds = array<i64: 1, 128>}, {pipeline_mode = #tpu.pipeline_mode<synchronous>, transform_indices = @transform_7, window_bounds = array<i64: 128, 128>}, {pipeline_mode = #tpu.pipeline_mode<synchronous>, transform_indices = @transform_8, window_bounds = array<i64: 1, 128>}, {pipeline_mode = #tpu.pipeline_mode<synchronous>, transform_indices = @transform_9, window_bounds = array<i64: 128, 128>}, {pipeline_mode = #tpu.pipeline_mode<synchronous>, transform_indices = @transform_10, window_bounds = array<i64: 1, 128>}, {transform_indices = @transform_11, window_bounds = array<i64: 8, 128>}]} {
    %c0 = arith.constant 0 : index
    %c0_0 = arith.constant 0 : index
    %c0_1 = arith.constant 0 : index
    %0 = vector.load %arg1[%c0, %c0_0, %c0_1] : memref<1x224x28xf32, #tpu.memory_space<vmem>>, vector<1x224x28xf32>
    %1 = vector.shape_cast %0 : vector<1x224x28xf32> to vector<224x28xf32>
    %2 = arith.truncf %1 : vector<224x28xf32> to vector<224x28xbf16>
    %c0_2 = arith.constant 0 : index
    %c0_3 = arith.constant 0 : index
    %3 = vector.load %arg2[%c0_2, %c0_3] : memref<28x1280xbf16, #tpu.memory_space<vmem>>, vector<28x1280xbf16>
    %cst = arith.constant dense<0.000000e+00> : vector<224x1280xf32>
    %4 = tpu.matmul %2, %3, %cst {dimension_numbers = #tpu.dot_dimension_numbers<[1], [0], [0], [1], [0, 0, 1, 1], [], []>} : vector<224x28xbf16>, vector<28x1280xbf16>, vector<224x1280xf32> -> vector<224x1280xf32>
    %5 = vector.extract_strided_slice %4 {offsets = [0, 0], sizes = [48, 256], strides = [1, 1]} : vector<224x1280xf32> to vector<48x256xf32>
    %6 = vector.extract_strided_slice %4 {offsets = [56, 256], sizes = [48, 256], strides = [1, 1]} : vector<224x1280xf32> to vector<48x256xf32>
    %7 = arith.addf %5, %6 : vector<48x256xf32>
    %8 = vector.extract_strided_slice %4 {offsets = [112, 512], sizes = [48, 256], strides = [1, 1]} : vector<224x1280xf32> to vector<48x256xf32>
    %9 = arith.addf %7, %8 : vector<48x256xf32>
    %10 = vector.extract_strided_slice %4 {offsets = [168, 768], sizes = [48, 256], strides = [1, 1]} : vector<224x1280xf32> to vector<48x256xf32>
    %11 = arith.addf %9, %10 : vector<48x256xf32>
    %12 = vector.extract_strided_slice %4 {offsets = [8, 1024], sizes = [48, 256], strides = [1, 1]} : vector<224x1280xf32> to vector<48x256xf32>
    %13 = arith.addf %11, %12 : vector<48x256xf32>
    %14 = vector.extract_strided_slice %4 {offsets = [56, 0], sizes = [48, 256], strides = [1, 1]} : vector<224x1280xf32> to vector<48x256xf32>
    %15 = vector.extract_strided_slice %4 {offsets = [112, 256], sizes = [48, 256], strides = [1, 1]} : vector<224x1280xf32> to vector<48x256xf32>
    %16 = arith.addf %14, %15 : vector<48x256xf32>
    %17 = vector.extract_strided_slice %4 {offsets = [168, 512], sizes = [48, 256], strides = [1, 1]} : vector<224x1280xf32> to vector<48x256xf32>
    %18 = arith.addf %16, %17 : vector<48x256xf32>
    %19 = vector.extract_strided_slice %4 {offsets = [8, 768], sizes = [48, 256], strides = [1, 1]} : vector<224x1280xf32> to vector<48x256xf32>
    %20 = arith.addf %18, %19 : vector<48x256xf32>
    %21 = vector.extract_strided_slice %4 {offsets = [64, 1024], sizes = [48, 256], strides = [1, 1]} : vector<224x1280xf32> to vector<48x256xf32>
    %22 = arith.addf %20, %21 : vector<48x256xf32>
    %23 = vector.extract_strided_slice %4 {offsets = [112, 0], sizes = [48, 256], strides = [1, 1]} : vector<224x1280xf32> to vector<48x256xf32>
    %24 = vector.extract_strided_slice %4 {offsets = [168, 256], sizes = [48, 256], strides = [1, 1]} : vector<224x1280xf32> to vector<48x256xf32>
    %25 = arith.addf %23, %24 : vector<48x256xf32>
    %26 = vector.extract_strided_slice %4 {offsets = [8, 512], sizes = [48, 256], strides = [1, 1]} : vector<224x1280xf32> to vector<48x256xf32>
    %27 = arith.addf %25, %26 : vector<48x256xf32>
    %28 = vector.extract_strided_slice %4 {offsets = [64, 768], sizes = [48, 256], strides = [1, 1]} : vector<224x1280xf32> to vector<48x256xf32>
    %29 = arith.addf %27, %28 : vector<48x256xf32>
    %30 = vector.extract_strided_slice %4 {offsets = [120, 1024], sizes = [48, 256], strides = [1, 1]} : vector<224x1280xf32> to vector<48x256xf32>
    %31 = arith.addf %29, %30 : vector<48x256xf32>
    %32 = vector.extract_strided_slice %4 {offsets = [168, 0], sizes = [48, 256], strides = [1, 1]} : vector<224x1280xf32> to vector<48x256xf32>
    %33 = vector.extract_strided_slice %4 {offsets = [8, 256], sizes = [48, 256], strides = [1, 1]} : vector<224x1280xf32> to vector<48x256xf32>
    %34 = arith.addf %32, %33 : vector<48x256xf32>
    %35 = vector.extract_strided_slice %4 {offsets = [64, 512], sizes = [48, 256], strides = [1, 1]} : vector<224x1280xf32> to vector<48x256xf32>
    %36 = arith.addf %34, %35 : vector<48x256xf32>
    %37 = vector.extract_strided_slice %4 {offsets = [120, 768], sizes = [48, 256], strides = [1, 1]} : vector<224x1280xf32> to vector<48x256xf32>
    %38 = arith.addf %36, %37 : vector<48x256xf32>
    %39 = vector.extract_strided_slice %4 {offsets = [176, 1024], sizes = [48, 256], strides = [1, 1]} : vector<224x1280xf32> to vector<48x256xf32>
    %40 = arith.addf %38, %39 : vector<48x256xf32>
    %c0_4 = arith.constant 0 : index
    %c0_5 = arith.constant 0 : index
    %41 = vector.load %arg3[%c0_4, %c0_5] : memref<1x96xf32, #tpu.memory_space<vmem>>, vector<1x96xf32>
    %42 = vector.extract_strided_slice %13 {offsets = [0, 0], sizes = [48, 96], strides = [1, 1]} : vector<48x256xf32> to vector<48x96xf32>
    %43 = vector.extract_strided_slice %13 {offsets = [0, 128], sizes = [48, 96], strides = [1, 1]} : vector<48x256xf32> to vector<48x96xf32>
    %44 = arith.maximumf %42, %43 : vector<48x96xf32>
    %45 = vector.extract_strided_slice %22 {offsets = [0, 0], sizes = [48, 96], strides = [1, 1]} : vector<48x256xf32> to vector<48x96xf32>
    %46 = vector.extract_strided_slice %22 {offsets = [0, 128], sizes = [48, 96], strides = [1, 1]} : vector<48x256xf32> to vector<48x96xf32>
    %47 = arith.maximumf %45, %46 : vector<48x96xf32>
    %48 = arith.maximumf %44, %47 : vector<48x96xf32>
    %49 = vector.broadcast %41 : vector<1x96xf32> to vector<48x96xf32>
    %50 = arith.addf %48, %49 : vector<48x96xf32>
    %cst_6 = arith.constant 0.000000e+00 : f32
    %51 = vector.broadcast %cst_6 : f32 to vector<48x96xf32>
    %52 = arith.maximumf %50, %51 : vector<48x96xf32>
    %53 = vector.extract_strided_slice %31 {offsets = [0, 0], sizes = [48, 96], strides = [1, 1]} : vector<48x256xf32> to vector<48x96xf32>
    %54 = vector.extract_strided_slice %31 {offsets = [0, 128], sizes = [48, 96], strides = [1, 1]} : vector<48x256xf32> to vector<48x96xf32>
    %55 = arith.maximumf %53, %54 : vector<48x96xf32>
    %56 = vector.extract_strided_slice %40 {offsets = [0, 0], sizes = [48, 96], strides = [1, 1]} : vector<48x256xf32> to vector<48x96xf32>
    %57 = vector.extract_strided_slice %40 {offsets = [0, 128], sizes = [48, 96], strides = [1, 1]} : vector<48x256xf32> to vector<48x96xf32>
    %58 = arith.maximumf %56, %57 : vector<48x96xf32>
    %59 = arith.maximumf %55, %58 : vector<48x96xf32>
    %60 = vector.broadcast %41 : vector<1x96xf32> to vector<48x96xf32>
    %61 = arith.addf %59, %60 : vector<48x96xf32>
    %cst_7 = arith.constant 0.000000e+00 : f32
    %62 = vector.broadcast %cst_7 : f32 to vector<48x96xf32>
    %63 = arith.maximumf %61, %62 : vector<48x96xf32>
    %64 = tpu.concatenate %52, %63 in 0 : vector<48x96xf32>, vector<48x96xf32> -> vector<96x96xf32>
    %65 = arith.truncf %64 : vector<96x96xf32> to vector<96x96xbf16>
    %c0_8 = arith.constant 0 : index
    %c0_9 = arith.constant 0 : index
    %66 = vector.load %arg4[%c0_8, %c0_9] : memref<96x640xbf16, #tpu.memory_space<vmem>>, vector<96x640xbf16>
    %cst_10 = arith.constant dense<0.000000e+00> : vector<96x640xf32>
    %67 = tpu.matmul %65, %66, %cst_10 {dimension_numbers = #tpu.dot_dimension_numbers<[1], [0], [0], [1], [0, 0, 1, 1], [], []>} : vector<96x96xbf16>, vector<96x640xbf16>, vector<96x640xf32> -> vector<96x640xf32>
    %68 = vector.extract_strided_slice %67 {offsets = [0, 0], sizes = [32, 128], strides = [1, 1]} : vector<96x640xf32> to vector<32x128xf32>
    %69 = vector.extract_strided_slice %67 {offsets = [48, 128], sizes = [32, 128], strides = [1, 1]} : vector<96x640xf32> to vector<32x128xf32>
    %70 = arith.addf %68, %69 : vector<32x128xf32>
    %71 = vector.extract_strided_slice %67 {offsets = [8, 256], sizes = [32, 128], strides = [1, 1]} : vector<96x640xf32> to vector<32x128xf32>
    %72 = arith.addf %70, %71 : vector<32x128xf32>
    %73 = vector.extract_strided_slice %67 {offsets = [56, 384], sizes = [32, 128], strides = [1, 1]} : vector<96x640xf32> to vector<32x128xf32>
    %74 = arith.addf %72, %73 : vector<32x128xf32>
    %75 = vector.extract_strided_slice %67 {offsets = [16, 512], sizes = [32, 128], strides = [1, 1]} : vector<96x640xf32> to vector<32x128xf32>
    %76 = arith.addf %74, %75 : vector<32x128xf32>
    %77 = vector.extract_strided_slice %67 {offsets = [48, 0], sizes = [32, 128], strides = [1, 1]} : vector<96x640xf32> to vector<32x128xf32>
    %78 = vector.extract_strided_slice %67 {offsets = [8, 128], sizes = [32, 128], strides = [1, 1]} : vector<96x640xf32> to vector<32x128xf32>
    %79 = arith.addf %77, %78 : vector<32x128xf32>
    %80 = vector.extract_strided_slice %67 {offsets = [56, 256], sizes = [32, 128], strides = [1, 1]} : vector<96x640xf32> to vector<32x128xf32>
    %81 = arith.addf %79, %80 : vector<32x128xf32>
    %82 = vector.extract_strided_slice %67 {offsets = [16, 384], sizes = [32, 128], strides = [1, 1]} : vector<96x640xf32> to vector<32x128xf32>
    %83 = arith.addf %81, %82 : vector<32x128xf32>
    %84 = vector.extract_strided_slice %67 {offsets = [64, 512], sizes = [32, 128], strides = [1, 1]} : vector<96x640xf32> to vector<32x128xf32>
    %85 = arith.addf %83, %84 : vector<32x128xf32>
    %86 = vector.extract_strided_slice %76 {offsets = [0, 0], sizes = [32, 64], strides = [1, 1]} : vector<32x128xf32> to vector<32x64xf32>
    %87 = vector.extract_strided_slice %76 {offsets = [0, 64], sizes = [32, 64], strides = [1, 1]} : vector<32x128xf32> to vector<32x64xf32>
    %88 = arith.maximumf %86, %87 : vector<32x64xf32>
    %89 = vector.extract_strided_slice %85 {offsets = [0, 0], sizes = [32, 64], strides = [1, 1]} : vector<32x128xf32> to vector<32x64xf32>
    %90 = vector.extract_strided_slice %85 {offsets = [0, 64], sizes = [32, 64], strides = [1, 1]} : vector<32x128xf32> to vector<32x64xf32>
    %91 = arith.maximumf %89, %90 : vector<32x64xf32>
    %92 = arith.maximumf %88, %91 : vector<32x64xf32>
    %c0_11 = arith.constant 0 : index
    %c0_12 = arith.constant 0 : index
    %93 = vector.load %arg5[%c0_11, %c0_12] : memref<1x64xf32, #tpu.memory_space<vmem>>, vector<1x64xf32>
    %94 = vector.broadcast %93 : vector<1x64xf32> to vector<32x64xf32>
    %95 = arith.addf %92, %94 : vector<32x64xf32>
    %cst_13 = arith.constant 0.000000e+00 : f32
    %96 = vector.broadcast %cst_13 : f32 to vector<32x64xf32>
    %97 = arith.maximumf %95, %96 : vector<32x64xf32>
    %98 = vector.extract_strided_slice %97 {offsets = [0, 0], sizes = [8, 64], strides = [1, 1]} : vector<32x64xf32> to vector<8x64xf32>
    %99 = arith.truncf %98 : vector<8x64xf32> to vector<8x64xbf16>
    %c0_14 = arith.constant 0 : index
    %c0_15 = arith.constant 0 : index
    %100 = vector.load %arg6[%c0_14, %c0_15] : memref<256x128xbf16, #tpu.memory_space<vmem>>, vector<64x128xbf16>
    %cst_16 = arith.constant dense<0.000000e+00> : vector<8x128xf32>
    %101 = tpu.matmul %99, %100, %cst_16 {dimension_numbers = #tpu.dot_dimension_numbers<[1], [0], [0], [1], [0, 0, 1, 1], [], []>} : vector<8x64xbf16>, vector<64x128xbf16>, vector<8x128xf32> -> vector<8x128xf32>
    %102 = vector.extract_strided_slice %97 {offsets = [8, 0], sizes = [8, 64], strides = [1, 1]} : vector<32x64xf32> to vector<8x64xf32>
    %103 = arith.truncf %102 : vector<8x64xf32> to vector<8x64xbf16>
    %c64 = arith.constant 64 : index
    %c0_17 = arith.constant 0 : index
    %104 = vector.load %arg6[%c64, %c0_17] : memref<256x128xbf16, #tpu.memory_space<vmem>>, vector<64x128xbf16>
    %cst_18 = arith.constant dense<0.000000e+00> : vector<8x128xf32>
    %105 = tpu.matmul %103, %104, %cst_18 {dimension_numbers = #tpu.dot_dimension_numbers<[1], [0], [0], [1], [0, 0, 1, 1], [], []>} : vector<8x64xbf16>, vector<64x128xbf16>, vector<8x128xf32> -> vector<8x128xf32>
    %106 = arith.addf %101, %105 : vector<8x128xf32>
    %107 = vector.extract_strided_slice %97 {offsets = [16, 0], sizes = [8, 64], strides = [1, 1]} : vector<32x64xf32> to vector<8x64xf32>
    %108 = arith.truncf %107 : vector<8x64xf32> to vector<8x64xbf16>
    %c128 = arith.constant 128 : index
    %c0_19 = arith.constant 0 : index
    %109 = vector.load %arg6[%c128, %c0_19] : memref<256x128xbf16, #tpu.memory_space<vmem>>, vector<64x128xbf16>
    %cst_20 = arith.constant dense<0.000000e+00> : vector<8x128xf32>
    %110 = tpu.matmul %108, %109, %cst_20 {dimension_numbers = #tpu.dot_dimension_numbers<[1], [0], [0], [1], [0, 0, 1, 1], [], []>} : vector<8x64xbf16>, vector<64x128xbf16>, vector<8x128xf32> -> vector<8x128xf32>
    %111 = arith.addf %106, %110 : vector<8x128xf32>
    %112 = vector.extract_strided_slice %97 {offsets = [24, 0], sizes = [8, 64], strides = [1, 1]} : vector<32x64xf32> to vector<8x64xf32>
    %113 = arith.truncf %112 : vector<8x64xf32> to vector<8x64xbf16>
    %c192 = arith.constant 192 : index
    %c0_21 = arith.constant 0 : index
    %114 = vector.load %arg6[%c192, %c0_21] : memref<256x128xbf16, #tpu.memory_space<vmem>>, vector<64x128xbf16>
    %cst_22 = arith.constant dense<0.000000e+00> : vector<8x128xf32>
    %115 = tpu.matmul %113, %114, %cst_22 {dimension_numbers = #tpu.dot_dimension_numbers<[1], [0], [0], [1], [0, 0, 1, 1], [], []>} : vector<8x64xbf16>, vector<64x128xbf16>, vector<8x128xf32> -> vector<8x128xf32>
    %116 = arith.addf %111, %115 : vector<8x128xf32>
    %c0_23 = arith.constant 0 : index
    %c0_24 = arith.constant 0 : index
    %117 = vector.load %arg7[%c0_23, %c0_24] : memref<1x128xf32, #tpu.memory_space<vmem>>, vector<1x128xf32>
    %118 = vector.broadcast %117 : vector<1x128xf32> to vector<8x128xf32>
    %119 = arith.addf %116, %118 : vector<8x128xf32>
    %cst_25 = arith.constant 0.000000e+00 : f32
    %120 = vector.broadcast %cst_25 : f32 to vector<8x128xf32>
    %121 = arith.maximumf %119, %120 : vector<8x128xf32>
    %122 = arith.truncf %121 : vector<8x128xf32> to vector<8x128xbf16>
    %c0_26 = arith.constant 0 : index
    %c0_27 = arith.constant 0 : index
    %123 = vector.load %arg8[%c0_26, %c0_27] : memref<128x128xbf16, #tpu.memory_space<vmem>>, vector<128x128xbf16>
    %cst_28 = arith.constant dense<0.000000e+00> : vector<8x128xf32>
    %124 = tpu.matmul %122, %123, %cst_28 {dimension_numbers = #tpu.dot_dimension_numbers<[1], [0], [0], [1], [0, 0, 1, 1], [], []>} : vector<8x128xbf16>, vector<128x128xbf16>, vector<8x128xf32> -> vector<8x128xf32>
    %c0_29 = arith.constant 0 : index
    %c0_30 = arith.constant 0 : index
    %125 = vector.load %arg9[%c0_29, %c0_30] : memref<1x128xf32, #tpu.memory_space<vmem>>, vector<1x128xf32>
    %126 = vector.broadcast %125 : vector<1x128xf32> to vector<8x128xf32>
    %127 = arith.addf %124, %126 : vector<8x128xf32>
    %cst_31 = arith.constant 0.000000e+00 : f32
    %128 = vector.broadcast %cst_31 : f32 to vector<8x128xf32>
    %129 = arith.maximumf %127, %128 : vector<8x128xf32>
    %130 = arith.truncf %129 : vector<8x128xf32> to vector<8x128xbf16>
    %c0_32 = arith.constant 0 : index
    %c0_33 = arith.constant 0 : index
    %131 = vector.load %arg10[%c0_32, %c0_33] : memref<128x128xbf16, #tpu.memory_space<vmem>>, vector<128x128xbf16>
    %cst_34 = arith.constant dense<0.000000e+00> : vector<8x128xf32>
    %132 = tpu.matmul %130, %131, %cst_34 {dimension_numbers = #tpu.dot_dimension_numbers<[1], [0], [0], [1], [0, 0, 1, 1], [], []>} : vector<8x128xbf16>, vector<128x128xbf16>, vector<8x128xf32> -> vector<8x128xf32>
    %c0_35 = arith.constant 0 : index
    %c0_36 = arith.constant 0 : index
    %133 = vector.load %arg11[%c0_35, %c0_36] : memref<1x128xf32, #tpu.memory_space<vmem>>, vector<1x128xf32>
    %134 = vector.broadcast %133 : vector<1x128xf32> to vector<8x128xf32>
    %135 = arith.addf %132, %134 : vector<8x128xf32>
    %c0_37 = arith.constant 0 : index
    %c0_38 = arith.constant 0 : index
    %136 = vector.load %arg12[%c0_37, %c0_38] : memref<8x128xf32, #tpu.memory_space<vmem>>, vector<8x128xf32>
    tpu.vector_store %arg12[%c0_37, %c0_38], %135 {strides = array<i32>} : memref<8x128xf32, #tpu.memory_space<vmem>>, vector<8x128xf32>,
    return
  }
  func.func @transform_0(%arg0: i32) -> (i32, i32, i32) {
    %c0_i32 = arith.constant 0 : i32
    %c0_i32_0 = arith.constant 0 : i32
    %c0_i32_1 = arith.constant 0 : i32
    return %arg0, %c0_i32, %c0_i32_0 : i32, i32, i32
  }
  func.func @transform_1(%arg0: i32) -> (i32, i32) {
    %c0_i32 = arith.constant 0 : i32
    %c0_i32_0 = arith.constant 0 : i32
    %c0_i32_1 = arith.constant 0 : i32
    return %c0_i32, %c0_i32_0 : i32, i32
  }
  func.func @transform_2(%arg0: i32) -> (i32, i32) {
    %c0_i32 = arith.constant 0 : i32
    %c0_i32_0 = arith.constant 0 : i32
    %c0_i32_1 = arith.constant 0 : i32
    return %c0_i32, %c0_i32_0 : i32, i32
  }
  func.func @transform_3(%arg0: i32) -> (i32, i32) {
    %c0_i32 = arith.constant 0 : i32
    %c0_i32_0 = arith.constant 0 : i32
    %c0_i32_1 = arith.constant 0 : i32
    return %c0_i32, %c0_i32_0 : i32, i32
  }
  func.func @transform_4(%arg0: i32) -> (i32, i32) {
    %c0_i32 = arith.constant 0 : i32
    %c0_i32_0 = arith.constant 0 : i32
    %c0_i32_1 = arith.constant 0 : i32
    return %c0_i32, %c0_i32_0 : i32, i32
  }
  func.func @transform_5(%arg0: i32) -> (i32, i32) {
    %c0_i32 = arith.constant 0 : i32
    %c0_i32_0 = arith.constant 0 : i32
    %c0_i32_1 = arith.constant 0 : i32
    return %c0_i32, %c0_i32_0 : i32, i32
  }
  func.func @transform_6(%arg0: i32) -> (i32, i32) {
    %c0_i32 = arith.constant 0 : i32
    %c0_i32_0 = arith.constant 0 : i32
    %c0_i32_1 = arith.constant 0 : i32
    return %c0_i32, %c0_i32_0 : i32, i32
  }
  func.func @transform_7(%arg0: i32) -> (i32, i32) {
    %c0_i32 = arith.constant 0 : i32
    %c0_i32_0 = arith.constant 0 : i32
    %c0_i32_1 = arith.constant 0 : i32
    return %c0_i32, %c0_i32_0 : i32, i32
  }
  func.func @transform_8(%arg0: i32) -> (i32, i32) {
    %c0_i32 = arith.constant 0 : i32
    %c0_i32_0 = arith.constant 0 : i32
    %c0_i32_1 = arith.constant 0 : i32
    return %c0_i32, %c0_i32_0 : i32, i32
  }
  func.func @transform_9(%arg0: i32) -> (i32, i32) {
    %c0_i32 = arith.constant 0 : i32
    %c0_i32_0 = arith.constant 0 : i32
    %c0_i32_1 = arith.constant 0 : i32
    return %c0_i32, %c0_i32_0 : i32, i32
  }
  func.func @transform_10(%arg0: i32) -> (i32, i32) {
    %c0_i32 = arith.constant 0 : i32
    %c0_i32_0 = arith.constant 0 : i32
    %c0_i32_1 = arith.constant 0 : i32
    return %c0_i32, %c0_i32_0 : i32, i32
  }
  func.func @transform_11(%arg0: i32) -> (i32, i32) {
    %c0_i32 = arith.constant 0 : i32
    %c0_i32_0 = arith.constant 0 : i32
    return %arg0, %c0_i32 : i32, i32
  }
}

</mosaic_0001>

<llo_original>
// kernel: cnn_forward.1
$region0: #{cnn_forward.1}
  #allocation0 [shape = 'u32[]', space=smem, size = 0x4, offset = 0x4, fixed_abs, tag = 'smem constant byte address 0x4 - core index']
  #allocation1 [shape = 'u32[144,128]{1,0:T(1,128)}', space=vmem, size = 0x12000, scoped, tag = 'internal scratch']
  %s0 = inlined_call_operand.vmem [shape: f32[2,224,28], index: 0, kind: input, shape index: {}]
  %s1 = inlined_call_operand.vmem [shape: bf16[28,1280], index: 1, kind: input, shape index: {}]
  %s2 = inlined_call_operand.vmem [shape: f32[1,96], index: 2, kind: input, shape index: {}]
  %s3 = inlined_call_operand.vmem [shape: bf16[96,640], index: 3, kind: input, shape index: {}]
  %s4 = inlined_call_operand.vmem [shape: f32[1,64], index: 4, kind: input, shape index: {}]
  %s5 = inlined_call_operand.vmem [shape: bf16[256,128], index: 5, kind: input, shape index: {}]
  %s6 = inlined_call_operand.vmem [shape: f32[1,128], index: 6, kind: input, shape index: {}]
  %s7 = inlined_call_operand.vmem [shape: bf16[128,128], index: 7, kind: input, shape index: {}]
  %s8 = inlined_call_operand.vmem [shape: f32[1,128], index: 8, kind: input, shape index: {}]
  %s9 = inlined_call_operand.vmem [shape: bf16[128,128], index: 9, kind: input, shape index: {}]
  %s10 = inlined_call_operand.vmem [shape: f32[1,128], index: 10, kind: input, shape index: {}]
  %s11 = inlined_call_operand.hbm [shape: f32[16,128], index: 11, kind: output, shape index: {}]
  %s12 = sld [smem:[#allocation0]]
  $region77: #{cnn_forward.1} parent=0
    _
  %s14 = ssub.s32 1, %s12
  %s15 = scalar_select 0, %s14, %s12
  $region1: #{cnn_forward.1} parent=0
    #allocation2 [shape = 'u8[8192]{0}', space=vmem, size = 0x2000, scoped, tag = 'output window, operand 0']
    #allocation3 [shape = 's32[2]{0}', space=sflag, size = 0x8, scoped, tag = 'scoped memory for cnn_forward.1']
    %16 = vsyncpa [#allocation3], 0
    %s17 = scalar_lea.sflag [#allocation3], 1
    %18 = vsyncpa %s17, 0
    loop: start=0, step=1, limit=4
    $region2: #{cnn_forward.1} parent=1 // loop_pre_header
      _
    $region3: #{cnn_forward.1} parent=1 // loop_header
      %s20 = sphi 0, %s24
      %p21 = scmp.ge.s32.totalorder %s20, 4
      %s30 = sphi 0, %s32
      %s33 = sphi 0, %s30
      %s34 = sphi 0, %s33
      %s50 = sphi 0, %s34
      %s54 = sphi 0, %s54
      %s56 = sphi 0, %s54
      %s57 = sphi 0, %s56
      %s71 = sphi 0, %s57
      %s75 = sphi 0, %s75
      %s77 = sphi 0, %s75
      %s78 = sphi 0, %s77
      %s92 = sphi 0, %s78
      %s96 = sphi 0, %s96
      %s98 = sphi 0, %s96
      %s99 = sphi 0, %s98
      %s113 = sphi 0, %s99
      %s117 = sphi 0, %s117
      %s119 = sphi 0, %s117
      %s120 = sphi 0, %s119
      %s134 = sphi 0, %s120
      %s138 = sphi 0, %s138
      %s140 = sphi 0, %s138
      %s141 = sphi 0, %s140
      %s155 = sphi 0, %s141
      %s159 = sphi 0, %s159
      %s161 = sphi 0, %s159
      %s162 = sphi 0, %s161
      %s176 = sphi 0, %s162
      %s180 = sphi 0, %s180
      %s182 = sphi 0, %s180
      %s183 = sphi 0, %s182
      %s197 = sphi 0, %s183
      %s201 = sphi 0, %s201
      %s203 = sphi 0, %s201
      %s204 = sphi 0, %s203
      %s218 = sphi 0, %s204
      %s222 = sphi 0, %s222
      %s224 = sphi 0, %s222
      %s225 = sphi 0, %s224
      %s239 = sphi 0, %s225
      %s243 = sphi 0, %s243
      %s245 = sphi 0, %s243
      %s246 = sphi 0, %s245
      %s260 = sphi 0, %s246
      %s266 = sphi 0, %s268
      %s269 = sphi 0, %s266
      %s270 = sphi 0, %s269
      %s286 = sphi 0, %s270
    $region4: #{cnn_forward.1} parent=1 // loop_header_branch
      %23 = sbr.rel (%p21) target = $region8
    $region5: #{cnn_forward.1} parent=1 // loop_body
      %s25 = ssub.s32 %s20, 1
      %s26 = ssub.s32 %s20, 2
      %s27 = sadd.s32 %s20, 1
      %s28 = ssub.s32 %s20, %s27
      %p29 = scmp.eq.s32.totalorder %s28, 0
      %s31 = sadd.s32 %s30, 1
      %s32 = scalar_select %p29, %s30, %s31
      %p35 = pneg %p29
      %p36 = scmp.eq.s32.totalorder %s20, 1
      %p37 = por %p35, %p36
      %p38 = scmp.ne.s32.totalorder %s30, %s33
      %p39 = scmp.eq.s32.totalorder %s20, 0
      %p40 = por %p38, %p39
      %p41 = scmp.ne.s32.totalorder %s30, %s33
      %p42 = scmp.eq.s32.totalorder %s25, 1
      %p43 = por %p41, %p42
      %p44 = scmp.ne.s32.totalorder %s33, %s34
      %p45 = scmp.eq.s32.totalorder %s25, 0
      %p46 = por %p44, %p45
      %p47 = scmp.ne.s32.totalorder %s33, %s34
      %p48 = scmp.eq.s32.totalorder %s26, 1
      %p49 = por %p47, %p48
      %p51 = scmp.ne.s32.totalorder %s34, %s50
      %p52 = scmp.eq.s32.totalorder %s26, 0
      %p53 = por %p51, %p52
      %s55 = sadd.s32 %s54, 1
      %p58 = scmp.eq.s32.totalorder %s20, 1
      %p59 = scmp.ne.s32.totalorder %s54, %s56
      %p60 = scmp.eq.s32.totalorder %s20, 0
      %p61 = por %p59, %p60
      %p62 = scmp.ne.s32.totalorder %s54, %s56
      %p63 = scmp.eq.s32.totalorder %s25, 1
      %p64 = por %p62, %p63
      %p65 = scmp.ne.s32.totalorder %s56, %s57
      %p66 = scmp.eq.s32.totalorder %s25, 0
      %p67 = por %p65, %p66
      %p68 = scmp.ne.s32.totalorder %s56, %s57
      %p69 = scmp.eq.s32.totalorder %s26, 1
      %p70 = por %p68, %p69
      %p72 = scmp.ne.s32.totalorder %s57, %s71
      %p73 = scmp.eq.s32.totalorder %s26, 0
      %p74 = por %p72, %p73
      %s76 = sadd.s32 %s75, 1
      %p79 = scmp.eq.s32.totalorder %s20, 1
      %p80 = scmp.ne.s32.totalorder %s75, %s77
      %p81 = scmp.eq.s32.totalorder %s20, 0
      %p82 = por %p80, %p81
      %p83 = scmp.ne.s32.totalorder %s75, %s77
      %p84 = scmp.eq.s32.totalorder %s25, 1
      %p85 = por %p83, %p84
      %p86 = scmp.ne.s32.totalorder %s77, %s78
      %p87 = scmp.eq.s32.totalorder %s25, 0
      %p88 = por %p86, %p87
      %p89 = scmp.ne.s32.totalorder %s77, %s78
      %p90 = scmp.eq.s32.totalorder %s26, 1
      %p91 = por %p89, %p90
      %p93 = scmp.ne.s32.totalorder %s78, %s92
      %p94 = scmp.eq.s32.totalorder %s26, 0
      %p95 = por %p93, %p94
      %s97 = sadd.s32 %s96, 1
      %p100 = scmp.eq.s32.totalorder %s20, 1
      %p101 = scmp.ne.s32.totalorder %s96, %s98
      %p102 = scmp.eq.s32.totalorder %s20, 0
      %p103 = por %p101, %p102
      %p104 = scmp.ne.s32.totalorder %s96, %s98
      %p105 = scmp.eq.s32.totalorder %s25, 1
      %p106 = por %p104, %p105
      %p107 = scmp.ne.s32.totalorder %s98, %s99
      %p108 = scmp.eq.s32.totalorder %s25, 0
      %p109 = por %p107, %p108
      %p110 = scmp.ne.s32.totalorder %s98, %s99
      %p111 = scmp.eq.s32.totalorder %s26, 1
      %p112 = por %p110, %p111
      %p114 = scmp.ne.s32.totalorder %s99, %s113
      %p115 = scmp.eq.s32.totalorder %s26, 0
      %p116 = por %p114, %p115
      %s118 = sadd.s32 %s117, 1
      %p121 = scmp.eq.s32.totalorder %s20, 1
      %p122 = scmp.ne.s32.totalorder %s117, %s119
      %p123 = scmp.eq.s32.totalorder %s20, 0
      %p124 = por %p122, %p123
      %p125 = scmp.ne.s32.totalorder %s117, %s119
      %p126 = scmp.eq.s32.totalorder %s25, 1
      %p127 = por %p125, %p126
      %p128 = scmp.ne.s32.totalorder %s119, %s120
      %p129 = scmp.eq.s32.totalorder %s25, 0
      %p130 = por %p128, %p129
      %p131 = scmp.ne.s32.totalorder %s119, %s120
      %p132 = scmp.eq.s32.totalorder %s26, 1
      %p133 = por %p131, %p132
      %p135 = scmp.ne.s32.totalorder %s120, %s134
      %p136 = scmp.eq.s32.totalorder %s26, 0
      %p137 = por %p135, %p136
      %s139 = sadd.s32 %s138, 1
      %p142 = scmp.eq.s32.totalorder %s20, 1
      %p143 = scmp.ne.s32.totalorder %s138, %s140
      %p144 = scmp.eq.s32.totalorder %s20, 0
      %p145 = por %p143, %p144
      %p146 = scmp.ne.s32.totalorder %s138, %s140
      %p147 = scmp.eq.s32.totalorder %s25, 1
      %p148 = por %p146, %p147
      %p149 = scmp.ne.s32.totalorder %s140, %s141
      %p150 = scmp.eq.s32.totalorder %s25, 0
      %p151 = por %p149, %p150
      %p152 = scmp.ne.s32.totalorder %s140, %s141
      %p153 = scmp.eq.s32.totalorder %s26, 1
      %p154 = por %p152, %p153
      %p156 = scmp.ne.s32.totalorder %s141, %s155
      %p157 = scmp.eq.s32.totalorder %s26, 0
      %p158 = por %p156, %p157
      %s160 = sadd.s32 %s159, 1
      %p163 = scmp.eq.s32.totalorder %s20, 1
      %p164 = scmp.ne.s32.totalorder %s159, %s161
      %p165 = scmp.eq.s32.totalorder %s20, 0
      %p166 = por %p164, %p165
      %p167 = scmp.ne.s32.totalorder %s159, %s161
      %p168 = scmp.eq.s32.totalorder %s25, 1
      %p169 = por %p167, %p168
      %p170 = scmp.ne.s32.totalorder %s161, %s162
      %p171 = scmp.eq.s32.totalorder %s25, 0
      %p172 = por %p170, %p171
      %p173 = scmp.ne.s32.totalorder %s161, %s162
      %p174 = scmp.eq.s32.totalorder %s26, 1
      %p175 = por %p173, %p174
      %p177 = scmp.ne.s32.totalorder %s162, %s176
      %p178 = scmp.eq.s32.totalorder %s26, 0
      %p179 = por %p177, %p178
      %s181 = sadd.s32 %s180, 1
      %p184 = scmp.eq.s32.totalorder %s20, 1
      %p185 = scmp.ne.s32.totalorder %s180, %s182
      %p186 = scmp.eq.s32.totalorder %s20, 0
      %p187 = por %p185, %p186
      %p188 = scmp.ne.s32.totalorder %s180, %s182
      %p189 = scmp.eq.s32.totalorder %s25, 1
      %p190 = por %p188, %p189
      %p191 = scmp.ne.s32.totalorder %s182, %s183
      %p192 = scmp.eq.s32.totalorder %s25, 0
      %p193 = por %p191, %p192
      %p194 = scmp.ne.s32.totalorder %s182, %s183
      %p195 = scmp.eq.s32.totalorder %s26, 1
      %p196 = por %p194, %p195
      %p198 = scmp.ne.s32.totalorder %s183, %s197
      %p199 = scmp.eq.s32.totalorder %s26, 0
      %p200 = por %p198, %p199
      %s202 = sadd.s32 %s201, 1
      %p205 = scmp.eq.s32.totalorder %s20, 1
      %p206 = scmp.ne.s32.totalorder %s201, %s203
      %p207 = scmp.eq.s32.totalorder %s20, 0
      %p208 = por %p206, %p207
      %p209 = scmp.ne.s32.totalorder %s201, %s203
      %p210 = scmp.eq.s32.totalorder %s25, 1
      %p211 = por %p209, %p210
      %p212 = scmp.ne.s32.totalorder %s203, %s204
      %p213 = scmp.eq.s32.totalorder %s25, 0
      %p214 = por %p212, %p213
      %p215 = scmp.ne.s32.totalorder %s203, %s204
      %p216 = scmp.eq.s32.totalorder %s26, 1
      %p217 = por %p215, %p216
      %p219 = scmp.ne.s32.totalorder %s204, %s218
      %p220 = scmp.eq.s32.totalorder %s26, 0
      %p221 = por %p219, %p220
      %s223 = sadd.s32 %s222, 1
      %p226 = scmp.eq.s32.totalorder %s20, 1
      %p227 = scmp.ne.s32.totalorder %s222, %s224
      %p228 = scmp.eq.s32.totalorder %s20, 0
      %p229 = por %p227, %p228
      %p230 = scmp.ne.s32.totalorder %s222, %s224
      %p231 = scmp.eq.s32.totalorder %s25, 1
      %p232 = por %p230, %p231
      %p233 = scmp.ne.s32.totalorder %s224, %s225
      %p234 = scmp.eq.s32.totalorder %s25, 0
      %p235 = por %p233, %p234
      %p236 = scmp.ne.s32.totalorder %s224, %s225
      %p237 = scmp.eq.s32.totalorder %s26, 1
      %p238 = por %p236, %p237
      %p240 = scmp.ne.s32.totalorder %s225, %s239
      %p241 = scmp.eq.s32.totalorder %s26, 0
      %p242 = por %p240, %p241
      %s244 = sadd.s32 %s243, 1
      %p247 = scmp.eq.s32.totalorder %s20, 1
      %p248 = scmp.ne.s32.totalorder %s243, %s245
      %p249 = scmp.eq.s32.totalorder %s20, 0
      %p250 = por %p248, %p249
      %p251 = scmp.ne.s32.totalorder %s243, %s245
      %p252 = scmp.eq.s32.totalorder %s25, 1
      %p253 = por %p251, %p252
      %p254 = scmp.ne.s32.totalorder %s245, %s246
      %p255 = scmp.eq.s32.totalorder %s25, 0
      %p256 = por %p254, %p255
      %p257 = scmp.ne.s32.totalorder %s245, %s246
      %p258 = scmp.eq.s32.totalorder %s26, 1
      %p259 = por %p257, %p258
      %p261 = scmp.ne.s32.totalorder %s246, %s260
      %p262 = scmp.eq.s32.totalorder %s26, 0
      %p263 = por %p261, %p262
      %s264 = ssub.s32 %s20, %s27
      %p265 = scmp.eq.s32.totalorder %s264, 0
      %s267 = sadd.s32 %s266, 1
      %s268 = scalar_select %p265, %s266, %s267
      %p271 = pneg %p265
      %p272 = scmp.eq.s32.totalorder %s20, 1
      %p273 = por %p271, %p272
      %p274 = scmp.ne.s32.totalorder %s266, %s269
      %p275 = scmp.eq.s32.totalorder %s20, 0
      %p276 = por %p274, %p275
      %p277 = scmp.ne.s32.totalorder %s266, %s269
      %p278 = scmp.eq.s32.totalorder %s25, 1
      %p279 = por %p277, %p278
      %p280 = scmp.ne.s32.totalorder %s269, %s270
      %p281 = scmp.eq.s32.totalorder %s25, 0
      %p282 = por %p280, %p281
      %p283 = scmp.ne.s32.totalorder %s269, %s270
      %p284 = scmp.eq.s32.totalorder %s26, 1
      %p285 = por %p283, %p284
      %p287 = scmp.ne.s32.totalorder %s270, %s286
      %p288 = scmp.eq.s32.totalorder %s26, 0
      %p289 = por %p287, %p288
      %p290 = scmp.le.s32.totalorder 1, %s20
      %p291 = scmp.lt.s32.totalorder %s20, 3
      %p292 = pnand %p290, %p291
      %p293 = pneg %p292
      // Predicated region
      $region9: #{cnn_forward.1} parent=5 // pred_check
        _
      $region10: #{cnn_forward.1} parent=5 // pred_check_branch
        %295 = sbr.rel (%p292) target = $region12
      $region11: #{cnn_forward.1} parent=5 // pred_region
        %s296 = ssub.s32 %s20, 1
        // Predicated region
        $region13: #{cnn_forward.1} parent=11 // pred_check
          %p297 = pneg %p67
        $region14: #{cnn_forward.1} parent=11 // pred_check_branch
          %299 = sbr.rel (%p297) target = $region16
        $region15: #{cnn_forward.1} parent=11 // pred_region
          _
        $region16: #{cnn_forward.1} parent=11 // pred_fallthru
          _
        // Predicated region
        $region17: #{cnn_forward.1} parent=11 // pred_check
          %p300 = pneg %p88
        $region18: #{cnn_forward.1} parent=11 // pred_check_branch
          %302 = sbr.rel (%p300) target = $region20
        $region19: #{cnn_forward.1} parent=11 // pred_region
          _
        $region20: #{cnn_forward.1} parent=11 // pred_fallthru
          _
        // Predicated region
        $region21: #{cnn_forward.1} parent=11 // pred_check
          %p303 = pneg %p109
        $region22: #{cnn_forward.1} parent=11 // pred_check_branch
          %305 = sbr.rel (%p303) target = $region24
        $region23: #{cnn_forward.1} parent=11 // pred_region
          _
        $region24: #{cnn_forward.1} parent=11 // pred_fallthru
          _
        // Predicated region
        $region25: #{cnn_forward.1} parent=11 // pred_check
          %p306 = pneg %p130
        $region26: #{cnn_forward.1} parent=11 // pred_check_branch
          %308 = sbr.rel (%p306) target = $region28
        $region27: #{cnn_forward.1} parent=11 // pred_region
          _
        $region28: #{cnn_forward.1} parent=11 // pred_fallthru
          _
        // Predicated region
        $region29: #{cnn_forward.1} parent=11 // pred_check
          %p309 = pneg %p151
        $region30: #{cnn_forward.1} parent=11 // pred_check_branch
          %311 = sbr.rel (%p309) target = $region32
        $region31: #{cnn_forward.1} parent=11 // pred_region
          _
        $region32: #{cnn_forward.1} parent=11 // pred_fallthru
          _
        // Predicated region
        $region33: #{cnn_forward.1} parent=11 // pred_check
          %p312 = pneg %p172
        $region34: #{cnn_forward.1} parent=11 // pred_check_branch
          %314 = sbr.rel (%p312) target = $region36
        $region35: #{cnn_forward.1} parent=11 // pred_region
          _
        $region36: #{cnn_forward.1} parent=11 // pred_fallthru
          _
        // Predicated region
        $region37: #{cnn_forward.1} parent=11 // pred_check
          %p315 = pneg %p193
        $region38: #{cnn_forward.1} parent=11 // pred_check_branch
          %317 = sbr.rel (%p315) target = $region40
        $region39: #{cnn_forward.1} parent=11 // pred_region
          _
        $region40: #{cnn_forward.1} parent=11 // pred_fallthru
          _
        // Predicated region
        $region41: #{cnn_forward.1} parent=11 // pred_check
          %p318 = pneg %p214
        $region42: #{cnn_forward.1} parent=11 // pred_check_branch
          %320 = sbr.rel (%p318) target = $region44
        $region43: #{cnn_forward.1} parent=11 // pred_region
          _
        $region44: #{cnn_forward.1} parent=11 // pred_fallthru
          _
        // Predicated region
        $region45: #{cnn_forward.1} parent=11 // pred_check
          %p321 = pneg %p235
        $region46: #{cnn_forward.1} parent=11 // pred_check_branch
          %323 = sbr.rel (%p321) target = $region48
        $region47: #{cnn_forward.1} parent=11 // pred_region
          _
        $region48: #{cnn_forward.1} parent=11 // pred_fallthru
          _
        // Predicated region
        $region49: #{cnn_forward.1} parent=11 // pred_check
          %p324 = pneg %p256
        $region50: #{cnn_forward.1} parent=11 // pred_check_branch
          %326 = sbr.rel (%p324) target = $region52
        $region51: #{cnn_forward.1} parent=11 // pred_region
          _
        $region52: #{cnn_forward.1} parent=11 // pred_fallthru
          _
      $region12: #{cnn_forward.1} parent=5 // pred_fallthru
        _
      %p327 = scmp.lt.s32.totalorder %s20, 2
      // Predicated region
      $region53: #{cnn_forward.1} parent=5 // pred_check
        %p328 = pneg %p327
      $region54: #{cnn_forward.1} parent=5 // pred_check_branch
        %330 = sbr.rel (%p328) target = $region56
      $region55: #{cnn_forward.1} parent=5 // pred_region
        // Predicated region
        $region57: #{cnn_forward.1} parent=55 // pred_check
          %p331 = pneg %p40
        $region58: #{cnn_forward.1} parent=55 // pred_check_branch
          %333 = sbr.rel (%p331) target = $region60
        $region59: #{cnn_forward.1} parent=55 // pred_region
          %p334 = scmp.lt.s32.totalorder %s20, 1
          %s335 = scalar_select %p334, %s20, 1
          %s336 = smul.addr %s335, 28
          %s337 = smul.addr %s336, 8
          %s338 = scalar_lea.vmem %s0, %s337
        $region60: #{cnn_forward.1} parent=55 // pred_fallthru
          _
      $region56: #{cnn_forward.1} parent=5 // pred_fallthru
        _
      %p339 = scmp.le.s32.totalorder 1, %s20
      %p340 = scmp.lt.s32.totalorder %s20, 3
      %p341 = pnand %p339, %p340
      %p342 = pneg %p341
      // Predicated region
      $region61: #{cnn_forward.1} parent=5 // pred_check
        _
      $region62: #{cnn_forward.1} parent=5 // pred_check_branch
        %344 = sbr.rel (%p341) target = $region64
      $region63: #{cnn_forward.1} parent=5 // pred_region
        %s345 = ssub.s32 %s20, 1
        %p346 = scmp.lt.s32.totalorder %s25, 1
        %s347 = scalar_select %p346, %s25, 1
        %s348 = smul.addr %s347, 28
        %s349 = smul.addr %s348, 8
        %s350 = scalar_lea.vmem %s0, %s349
        %p351 = pneg %p46
        %p352 = pneg %p43
        %p353 = pneg %p67
        %p354 = pneg %p64
        %p355 = pneg %p88
        %p356 = pneg %p85
        %p357 = pneg %p109
        %p358 = pneg %p106
        %p359 = pneg %p130
        %p360 = pneg %p127
        %p361 = pneg %p151
        %p362 = pneg %p148
        %p363 = pneg %p172
        %p364 = pneg %p169
        %p365 = pneg %p193
        %p366 = pneg %p190
        %p367 = pneg %p214
        %p368 = pneg %p211
        %p369 = pneg %p235
        %p370 = pneg %p232
        %p371 = pneg %p256
        %p372 = pneg %p253
        %p373 = pneg %p282
        %p374 = pneg %p279
        %s375 = sand.u32 %s269, 1
        %s376 = scalar_lea.sflag [#allocation3], %s375
        %s377 = sand.u32 %s269, 1
        %s378 = smul.addr %s377, 8
        %s379 = scalar_lea.vmem [#allocation2], %s378
        %p380 = scmp.lt.s32.totalorder %s25, 1
        %s381 = scalar_select %p380, %s25, 1
        %s382 = smul.addr %s381, 28
        %s383 = smul.addr %s382, 8
        %s384 = scalar_lea.vmem %s0, %s383
        %v386 = vld [vmem:[%s384] sm:$0xff]
        %v387 = vld [vmem:[%s384 + $0x8] sm:$0xff]
        %v388 = vld [vmem:[%s384 + $0x10] sm:$0xff]
        %v389 = vld [vmem:[%s384 + $0x18] sm:$0xff]
        %v390 = vld [vmem:[%s384 + $0x20] sm:$0xff]
        %v391 = vld [vmem:[%s384 + $0x28] sm:$0xff]
        %v392 = vld [vmem:[%s384 + $0x30] sm:$0xff]
        %v393 = vld [vmem:[%s384 + $0x38] sm:$0xff]
        %v394 = vld [vmem:[%s384 + $0x40] sm:$0xff]
        %v395 = vld [vmem:[%s384 + $0x48] sm:$0xff]
        %v396 = vld [vmem:[%s384 + $0x50] sm:$0xff]
        %v397 = vld [vmem:[%s384 + $0x58] sm:$0xff]
        %v398 = vld [vmem:[%s384 + $0x60] sm:$0xff]
        %v399 = vld [vmem:[%s384 + $0x68] sm:$0xff]
        %v400 = vld [vmem:[%s384 + $0x70] sm:$0xff]
        %v401 = vld [vmem:[%s384 + $0x78] sm:$0xff]
        %v402 = vld [vmem:[%s384 + $0x80] sm:$0xff]
        %v403 = vld [vmem:[%s384 + $0x88] sm:$0xff]
        %v404 = vld [vmem:[%s384 + $0x90] sm:$0xff]
        %v405 = vld [vmem:[%s384 + $0x98] sm:$0xff]
        %v406 = vld [vmem:[%s384 + $0xa0] sm:$0xff]
        %v407 = vld [vmem:[%s384 + $0xa8] sm:$0xff]
        %v408 = vld [vmem:[%s384 + $0xb0] sm:$0xff]
        %v409 = vld [vmem:[%s384 + $0xb8] sm:$0xff]
        %v410 = vld [vmem:[%s384 + $0xc0] sm:$0xff]
        %v411 = vld [vmem:[%s384 + $0xc8] sm:$0xff]
        %v412 = vld [vmem:[%s384 + $0xd0] sm:$0xff]
        %v413 = vld [vmem:[%s384 + $0xd8] sm:$0xff]
        %v414 = vpack.c.bf16 %v387, %v386
        %v415 = vpack.c.bf16 %v389, %v388
        %v416 = vpack.c.bf16 %v391, %v390
        %v417 = vpack.c.bf16 %v393, %v392
        %v418 = vpack.c.bf16 %v395, %v394
        %v419 = vpack.c.bf16 %v397, %v396
        %v420 = vpack.c.bf16 %v399, %v398
        %v421 = vpack.c.bf16 %v401, %v400
        %v422 = vpack.c.bf16 %v403, %v402
        %v423 = vpack.c.bf16 %v405, %v404
        %v424 = vpack.c.bf16 %v407, %v406
        %v425 = vpack.c.bf16 %v409, %v408
        %v426 = vpack.c.bf16 %v411, %v410
        %v427 = vpack.c.bf16 %v413, %v412
        %v428 = vld [vmem:[%s1] sm:$0xff]
        %v429 = vld [vmem:[%s1 + $0x8] sm:$0xff]
        %v430 = vld [vmem:[%s1 + $0x10] sm:$0xff]
        %v431 = vld [vmem:[%s1 + $0x18] sm:$0xff]
        %v432 = vld [vmem:[%s1 + $0x20] sm:$0xff]
        %v433 = vld [vmem:[%s1 + $0x28] sm:$0xff]
        %v434 = vld [vmem:[%s1 + $0x30] sm:$0xff]
        %v435 = vld [vmem:[%s1 + $0x38] sm:$0xff]
        %v436 = vld [vmem:[%s1 + $0x40] sm:$0xff]
        %v437 = vld [vmem:[%s1 + $0x48] sm:$0xff]
        %v438 = vld [vmem:[%s1 + $0x50] sm:$0xff]
        %v439 = vld [vmem:[%s1 + $0x58] sm:$0xff]
        %v440 = vld [vmem:[%s1 + $0x60] sm:$0xff]
        %v441 = vld [vmem:[%s1 + $0x68] sm:$0xff]
        %v442 = vld [vmem:[%s1 + $0x70] sm:$0xff]
        %v443 = vld [vmem:[%s1 + $0x78] sm:$0x33]
        %v444 = vld [vmem:[%s1 + $0x80] sm:$0x33]
        %v445 = vld [vmem:[%s1 + $0x88] sm:$0x33]
        %v446 = vld [vmem:[%s1 + $0x90] sm:$0x33]
        %v447 = vld [vmem:[%s1 + $0x98] sm:$0x33]
        %v468 = vunpack.c.l.b16 %v428
        %v469 = vunpack.c.h.b16 %v428
        %v470 = vunpack.c.l.b16 %v429
        %v471 = vunpack.c.h.b16 %v429
        %v472 = vunpack.c.l.b16 %v430
        %v473 = vunpack.c.h.b16 %v430
        %v474 = vunpack.c.l.b16 %v431
        %v475 = vunpack.c.h.b16 %v431
        %v476 = vunpack.c.l.b16 %v432
        %v477 = vunpack.c.h.b16 %v432
        %v478 = vunpack.c.l.b16 %v433
        %v479 = vunpack.c.h.b16 %v433
        %v480 = vunpack.c.l.b16 %v434
        %v481 = vunpack.c.h.b16 %v434
        %v482 = vunpack.c.l.b16 %v435
        %v483 = vunpack.c.h.b16 %v435
        %v484 = vunpack.c.l.b16 %v436
        %v485 = vunpack.c.h.b16 %v436
        %v486 = vunpack.c.l.b16 %v437
        %v487 = vunpack.c.h.b16 %v437
        %v488 = vunpack.c.l.b16 %v438
        %v489 = vunpack.c.h.b16 %v438
        %v490 = vunpack.c.l.b16 %v439
        %v491 = vunpack.c.h.b16 %v439
        %v492 = vunpack.c.l.b16 %v440
        %v493 = vunpack.c.h.b16 %v440
        %v494 = vunpack.c.l.b16 %v441
        %v495 = vunpack.c.h.b16 %v441
        %v496 = vunpack.c.l.b16 %v442
        %v497 = vunpack.c.h.b16 %v442
        %v498 = vunpack.c.l.b16 %v443
        %v499 = vunpack.c.h.b16 %v443
        %v500 = vunpack.c.l.b16 %v444
        %v501 = vunpack.c.h.b16 %v444
        %v502 = vunpack.c.l.b16 %v445
        %v503 = vunpack.c.h.b16 %v445
        %v504 = vunpack.c.l.b16 %v446
        %v505 = vunpack.c.h.b16 %v446
        %v506 = vunpack.c.l.b16 %v447
        %v507 = vunpack.c.h.b16 %v447
        %v508 = vpack.c.b16 %v478, %v468
        %v509 = vpack.c.b16 %v479, %v469
        %v510 = vpack.c.b16 %v480, %v470
        %v511 = vpack.c.b16 %v481, %v471
        %v512 = vpack.c.b16 %v482, %v472
        %v513 = vpack.c.b16 %v483, %v473
        %v514 = vpack.c.b16 %v484, %v474
        %v515 = vpack.c.b16 %v485, %v475
        %v516 = vpack.c.b16 %v486, %v476
        %v517 = vpack.c.b16 %v487, %v477
        %v518 = vpack.c.b16 %v498, %v488
        %v519 = vpack.c.b16 %v499, %v489
        %v520 = vpack.c.b16 %v500, %v490
        %v521 = vpack.c.b16 %v501, %v491
        %v522 = vpack.c.b16 %v502, %v492
        %v523 = vpack.c.b16 %v503, %v493
        %v524 = vpack.c.b16 %v504, %v494
        %v525 = vpack.c.b16 %v505, %v495
        %v526 = vpack.c.b16 %v506, %v496
        %v527 = vpack.c.b16 %v507, %v497
        %vm538 = vcmask 228352
        %v540 = vsel %vm538, %v414, 0
        %v543 = vsel %vm538, %v415, 0
        %v546 = vsel %vm538, %v416, 0
        %v549 = vsel %vm538, %v417, 0
        %v552 = vsel %vm538, %v418, 0
        %v555 = vsel %vm538, %v419, 0
        %v558 = vsel %vm538, %v420, 0
        %v561 = vsel %vm538, %v421, 0
        %v564 = vsel %vm538, %v422, 0
        %v567 = vsel %vm538, %v423, 0
        %v570 = vsel %vm538, %v424, 0
        %v573 = vsel %vm538, %v425, 0
        %v576 = vsel %vm538, %v426, 0
        %v579 = vsel %vm538, %v427, 0
        %vm581 = vcmask 1045504
        %v583 = vsel %vm581, %v518, 0
        %v586 = vsel %vm581, %v519, 0
        %v589 = vsel %vm581, %v520, 0
        %v592 = vsel %vm581, %v521, 0
        %v595 = vsel %vm581, %v522, 0
        %v598 = vsel %vm581, %v523, 0
        %v601 = vsel %vm581, %v524, 0
        %v604 = vsel %vm581, %v525, 0
        %v607 = vsel %vm581, %v526, 0
        %v610 = vsel %vm581, %v527, 0
        %612 = vmatprep.subr.bf16.mxu0 0
        %613 = vmatpush1.bf16.msra.mxu0 0
        %614 = vmatprep.subr.bf16.mxu0 0
        %615 = vmatpush1.bf16.msra.mxu0 0
        %616 = vmatprep.subr.bf16.mxu0 0
        %617 = vmatpush1.bf16.msra.mxu0 0
        %618 = vmatprep.subr.bf16.mxu0 0
        %619 = vmatpush1.bf16.msra.mxu0 0
        %620 = vmatprep.subr.bf16.mxu0 0
        %621 = vmatpush1.bf16.msra.mxu0 0
        %622 = vmatprep.subr.bf16.mxu0 0
        %623 = vmatpush1.bf16.msra.mxu0 0
        %624 = vmatprep.subr.bf16.mxu0 %v586
        %625 = vmatpush1.bf16.msra.mxu0 %v583
        %626 = vmatprep.subr.bf16.mxu0 %v509
        %627 = vmatpush1.bf16.msra.mxu0 %v508
        %628 = vmatprep.subr.bf16.mxu0 0
        %629 = vmatpush2.bf16.msra.mxu0 0
        %630 = vmatprep.subr.bf16.mxu0 0
        %631 = vmatpush2.bf16.msra.mxu0 0
        %632 = vmatprep.subr.bf16.mxu0 0
        %633 = vmatpush2.bf16.msra.mxu0 0
        %634 = vmatprep.subr.bf16.mxu0 0
        %635 = vmatpush2.bf16.msra.mxu0 0
        %636 = vmatprep.subr.bf16.mxu0 0
        %637 = vmatpush2.bf16.msra.mxu0 0
        %638 = vmatprep.subr.bf16.mxu0 0
        %639 = vmatpush2.bf16.msra.mxu0 0
        %640 = vmatprep.subr.bf16.mxu0 0
        %641 = vmatpush2.bf16.msra.mxu0 0
        %642 = vmatprep.subr.bf16.mxu0 0
        %643 = vmatpush2.bf16.msra.mxu0 0
        %644 = vmatprep.mubr.bf16.mxu0 0
        %645 = vmatmul.mubr.bf16.gmra.mxu0 %v540
        %v646 = vpop.f32.mrf.mxu0
        %v647 = vadd.f32 0.0, %v646
        %v648 = vpop.f32.mrf.mxu0
        %v649 = vadd.f32 0.0, %v648
        %v650 = vpop.f32.mrf.mxu0
        %v651 = vadd.f32 0.0, %v650
        %v652 = vpop.f32.mrf.mxu0
        %v653 = vadd.f32 0.0, %v652
        %654 = vmatprep.mubr.bf16.mxu0 0
        %655 = vmatmul.mubr.bf16.gmra.mxu0 %v543
        %v656 = vpop.f32.mrf.mxu0
        %v657 = vadd.f32 0.0, %v656
        %v658 = vpop.f32.mrf.mxu0
        %v659 = vadd.f32 0.0, %v658
        %v660 = vpop.f32.mrf.mxu0
        %v661 = vadd.f32 0.0, %v660
        %v662 = vpop.f32.mrf.mxu0
        %v663 = vadd.f32 0.0, %v662
        %664 = vmatprep.mubr.bf16.mxu0 0
        %665 = vmatmul.mubr.bf16.gmra.mxu0 %v546
        %v666 = vpop.f32.mrf.mxu0
        %v667 = vadd.f32 0.0, %v666
        %v668 = vpop.f32.mrf.mxu0
        %v669 = vadd.f32 0.0, %v668
        %v670 = vpop.f32.mrf.mxu0
        %v671 = vadd.f32 0.0, %v670
        %v672 = vpop.f32.mrf.mxu0
        %v673 = vadd.f32 0.0, %v672
        %674 = vmatprep.mubr.bf16.mxu0 0
        %675 = vmatmul.mubr.bf16.gmra.mxu0 %v549
        %v676 = vpop.f32.mrf.mxu0
        %v677 = vpop.f32.mrf.mxu0
        %v678 = vpop.f32.mrf.mxu0
        %v679 = vadd.f32 0.0, %v678
        %v680 = vpop.f32.mrf.mxu0
        %v681 = vadd.f32 0.0, %v680
        %682 = vmatprep.mubr.bf16.mxu0 0
        %683 = vmatmul.mubr.bf16.gmra.mxu0 %v552
        %v684 = vpop.f32.mrf.mxu0
        %v685 = vadd.f32 0.0, %v684
        %v686 = vpop.f32.mrf.mxu0
        %v687 = vadd.f32 0.0, %v686
        %v688 = vpop.f32.mrf.mxu0
        %v689 = vadd.f32 0.0, %v688
        %v690 = vpop.f32.mrf.mxu0
        %v691 = vadd.f32 0.0, %v690
        %692 = vmatprep.mubr.bf16.mxu0 0
        %693 = vmatmul.mubr.bf16.gmra.mxu0 %v555
        %v694 = vpop.f32.mrf.mxu0
        %v695 = vadd.f32 0.0, %v694
        %v696 = vpop.f32.mrf.mxu0
        %v697 = vadd.f32 0.0, %v696
        %v698 = vpop.f32.mrf.mxu0
        %v699 = vadd.f32 0.0, %v698
        %v700 = vpop.f32.mrf.mxu0
        %v701 = vadd.f32 0.0, %v700
        %702 = vmatprep.mubr.bf16.mxu0 0
        %703 = vmatmul.mubr.bf16.gmra.mxu0 %v558
        %v704 = vpop.f32.mrf.mxu0
        %v705 = vadd.f32 0.0, %v704
        %v706 = vpop.f32.mrf.mxu0
        %v707 = vadd.f32 0.0, %v706
        %v708 = vpop.f32.mrf.mxu0
        %v709 = vpop.f32.mrf.mxu0
        %710 = vmatprep.mubr.bf16.mxu0 0
        %711 = vmatmul.mubr.bf16.gmra.mxu0 %v561
        %v712 = vpop.f32.mrf.mxu0
        %v713 = vadd.f32 0.0, %v712
        %v714 = vpop.f32.mrf.mxu0
        %v715 = vadd.f32 0.0, %v714
        %v716 = vpop.f32.mrf.mxu0
        %v717 = vadd.f32 0.0, %v716
        %v718 = vpop.f32.mrf.mxu0
        %v719 = vadd.f32 0.0, %v718
        %720 = vmatprep.mubr.bf16.mxu0 0
        %721 = vmatmul.mubr.bf16.gmra.mxu0 %v564
        %v722 = vpop.f32.mrf.mxu0
        %v723 = vadd.f32 0.0, %v722
        %v724 = vpop.f32.mrf.mxu0
        %v725 = vadd.f32 0.0, %v724
        %v726 = vpop.f32.mrf.mxu0
        %v727 = vadd.f32 0.0, %v726
        %v728 = vpop.f32.mrf.mxu0
        %v729 = vadd.f32 0.0, %v728
        %730 = vmatprep.mubr.bf16.mxu0 0
        %731 = vmatmul.mubr.bf16.gmra.mxu0 %v567
        %v732 = vpop.f32.mrf.mxu0
        %v733 = vadd.f32 0.0, %v732
        %v734 = vpop.f32.mrf.mxu0
        %v735 = vadd.f32 0.0, %v734
        %v736 = vpop.f32.mrf.mxu0
        %v737 = vadd.f32 0.0, %v736
        %v738 = vpop.f32.mrf.mxu0
        %v739 = vadd.f32 0.0, %v738
        %740 = vmatprep.mubr.bf16.mxu0 0
        %741 = vmatmul.mubr.bf16.gmra.mxu0 %v570
        %v742 = vpop.f32.mrf.mxu0
        %v743 = vpop.f32.mrf.mxu0
        %v744 = vpop.f32.mrf.mxu0
        %v745 = vadd.f32 0.0, %v744
        %v746 = vpop.f32.mrf.mxu0
        %v747 = vadd.f32 0.0, %v746
        %748 = vmatprep.mubr.bf16.mxu0 0
        %749 = vmatmul.mubr.bf16.gmra.mxu0 %v573
        %v750 = vpop.f32.mrf.mxu0
        %v751 = vadd.f32 0.0, %v750
        %v752 = vpop.f32.mrf.mxu0
        %v753 = vadd.f32 0.0, %v752
        %v754 = vpop.f32.mrf.mxu0
        %v755 = vadd.f32 0.0, %v754
        %v756 = vpop.f32.mrf.mxu0
        %v757 = vadd.f32 0.0, %v756
        %758 = vmatprep.mubr.bf16.mxu0 0
        %759 = vmatmul.mubr.bf16.gmra.mxu0 %v576
        %v760 = vpop.f32.mrf.mxu0
        %v761 = vadd.f32 0.0, %v760
        %v762 = vpop.f32.mrf.mxu0
        %v763 = vadd.f32 0.0, %v762
        %v764 = vpop.f32.mrf.mxu0
        %v765 = vadd.f32 0.0, %v764
        %v766 = vpop.f32.mrf.mxu0
        %v767 = vadd.f32 0.0, %v766
        %768 = vmatprep.mubr.bf16.mxu0 0
        %769 = vmatmul.mubr.bf16.gmra.mxu0 %v579
        %v770 = vpop.f32.mrf.mxu0
        %v771 = vadd.f32 0.0, %v770
        %v772 = vpop.f32.mrf.mxu0
        %v773 = vadd.f32 0.0, %v772
        %v774 = vpop.f32.mrf.mxu0
        %v775 = vpop.f32.mrf.mxu0
        %776 = vdwg.mxu0
        %777 = vmatprep.subr.bf16.mxu0 0
        %778 = vmatpush1.bf16.msra.mxu0 0
        %779 = vmatprep.subr.bf16.mxu0 0
        %780 = vmatpush1.bf16.msra.mxu0 0
        %781 = vmatprep.subr.bf16.mxu0 0
        %782 = vmatpush1.bf16.msra.mxu0 0
        %783 = vmatprep.subr.bf16.mxu0 0
        %784 = vmatpush1.bf16.msra.mxu0 0
        %785 = vmatprep.subr.bf16.mxu0 0
        %786 = vmatpush1.bf16.msra.mxu0 0
        %787 = vmatprep.subr.bf16.mxu0 0
        %788 = vmatpush1.bf16.msra.mxu0 0
        %789 = vmatprep.subr.bf16.mxu0 %v592
        %790 = vmatpush1.bf16.msra.mxu0 %v589
        %791 = vmatprep.subr.bf16.mxu0 %v511
        %792 = vmatpush1.bf16.msra.mxu0 %v510
        %793 = vmatprep.subr.bf16.mxu0 0
        %794 = vmatpush2.bf16.msra.mxu0 0
        %795 = vmatprep.subr.bf16.mxu0 0
        %796 = vmatpush2.bf16.msra.mxu0 0
        %797 = vmatprep.subr.bf16.mxu0 0
        %798 = vmatpush2.bf16.msra.mxu0 0
        %799 = vmatprep.subr.bf16.mxu0 0
        %800 = vmatpush2.bf16.msra.mxu0 0
        %801 = vmatprep.subr.bf16.mxu0 0
        %802 = vmatpush2.bf16.msra.mxu0 0
        %803 = vmatprep.subr.bf16.mxu0 0
        %804 = vmatpush2.bf16.msra.mxu0 0
        %805 = vmatprep.subr.bf16.mxu0 0
        %806 = vmatpush2.bf16.msra.mxu0 0
        %807 = vmatprep.subr.bf16.mxu0 0
        %808 = vmatpush2.bf16.msra.mxu0 0
        %809 = vmatprep.mubr.bf16.mxu0 0
        %810 = vmatmul.mubr.bf16.gmra.mxu0 %v540
        %v811 = vpop.f32.mrf.mxu0
        %v812 = vpop.f32.mrf.mxu0
        %v813 = vpop.f32.mrf.mxu0
        %v814 = vadd.f32 0.0, %v813
        %v815 = vpop.f32.mrf.mxu0
        %v816 = vadd.f32 0.0, %v815
        %817 = vmatprep.mubr.bf16.mxu0 0
        %818 = vmatmul.mubr.bf16.gmra.mxu0 %v543
        %v819 = vpop.f32.mrf.mxu0
        %v820 = vadd.f32 0.0, %v819
        %v821 = vpop.f32.mrf.mxu0
        %v822 = vadd.f32 0.0, %v821
        %v823 = vpop.f32.mrf.mxu0
        %v824 = vadd.f32 0.0, %v823
        %v825 = vpop.f32.mrf.mxu0
        %v826 = vadd.f32 0.0, %v825
        %827 = vmatprep.mubr.bf16.mxu0 0
        %828 = vmatmul.mubr.bf16.gmra.mxu0 %v546
        %v829 = vpop.f32.mrf.mxu0
        %v830 = vadd.f32 0.0, %v829
        %v831 = vpop.f32.mrf.mxu0
        %v832 = vadd.f32 0.0, %v831
        %v833 = vpop.f32.mrf.mxu0
        %v834 = vadd.f32 0.0, %v833
        %v835 = vpop.f32.mrf.mxu0
        %v836 = vadd.f32 0.0, %v835
        %837 = vmatprep.mubr.bf16.mxu0 0
        %838 = vmatmul.mubr.bf16.gmra.mxu0 %v549
        %v839 = vpop.f32.mrf.mxu0
        %v840 = vadd.f32 0.0, %v839
        %v841 = vpop.f32.mrf.mxu0
        %v842 = vadd.f32 0.0, %v841
        %v843 = vpop.f32.mrf.mxu0
        %v844 = vadd.f32 0.0, %v843
        %v845 = vpop.f32.mrf.mxu0
        %v846 = vadd.f32 0.0, %v845
        %847 = vmatprep.mubr.bf16.mxu0 0
        %848 = vmatmul.mubr.bf16.gmra.mxu0 %v552
        %v849 = vpop.f32.mrf.mxu0
        %v850 = vadd.f32 0.0, %v849
        %v851 = vpop.f32.mrf.mxu0
        %v852 = vadd.f32 0.0, %v851
        %v853 = vpop.f32.mrf.mxu0
        %v854 = vadd.f32 0.0, %v853
        %v855 = vpop.f32.mrf.mxu0
        %v856 = vadd.f32 0.0, %v855
        %857 = vmatprep.mubr.bf16.mxu0 0
        %858 = vmatmul.mubr.bf16.gmra.mxu0 %v555
        %v859 = vpop.f32.mrf.mxu0
        %v860 = vadd.f32 0.0, %v859
        %v861 = vpop.f32.mrf.mxu0
        %v862 = vadd.f32 0.0, %v861
        %v863 = vpop.f32.mrf.mxu0
        %v864 = vadd.f32 0.0, %v863
        %v865 = vpop.f32.mrf.mxu0
        %v866 = vadd.f32 0.0, %v865
        %867 = vmatprep.mubr.bf16.mxu0 0
        %868 = vmatmul.mubr.bf16.gmra.mxu0 %v558
        %v869 = vpop.f32.mrf.mxu0
        %v870 = vadd.f32 0.0, %v869
        %v871 = vpop.f32.mrf.mxu0
        %v872 = vadd.f32 0.0, %v871
        %v873 = vpop.f32.mrf.mxu0
        %v874 = vpop.f32.mrf.mxu0
        %875 = vmatprep.mubr.bf16.mxu0 0
        %876 = vmatmul.mubr.bf16.gmra.mxu0 %v561
        %v877 = vpop.f32.mrf.mxu0
        %v878 = vadd.f32 0.0, %v877
        %v879 = vpop.f32.mrf.mxu0
        %v880 = vadd.f32 0.0, %v879
        %v881 = vpop.f32.mrf.mxu0
        %v882 = vadd.f32 0.0, %v881
        %v883 = vpop.f32.mrf.mxu0
        %v884 = vadd.f32 0.0, %v883
        %885 = vmatprep.mubr.bf16.mxu0 0
        %886 = vmatmul.mubr.bf16.gmra.mxu0 %v564
        %v887 = vpop.f32.mrf.mxu0
        %v888 = vadd.f32 0.0, %v887
        %v889 = vpop.f32.mrf.mxu0
        %v890 = vadd.f32 0.0, %v889
        %v891 = vpop.f32.mrf.mxu0
        %v892 = vadd.f32 0.0, %v891
        %v893 = vpop.f32.mrf.mxu0
        %v894 = vadd.f32 0.0, %v893
        %895 = vmatprep.mubr.bf16.mxu0 0
        %896 = vmatmul.mubr.bf16.gmra.mxu0 %v567
        %v897 = vpop.f32.mrf.mxu0
        %v898 = vadd.f32 0.0, %v897
        %v899 = vpop.f32.mrf.mxu0
        %v900 = vadd.f32 0.0, %v899
        %v901 = vpop.f32.mrf.mxu0
        %v902 = vadd.f32 0.0, %v901
        %v903 = vpop.f32.mrf.mxu0
        %v904 = vadd.f32 0.0, %v903
        %905 = vmatprep.mubr.bf16.mxu0 0
        %906 = vmatmul.mubr.bf16.gmra.mxu0 %v570
        %v907 = vpop.f32.mrf.mxu0
        %v908 = vpop.f32.mrf.mxu0
        %v909 = vpop.f32.mrf.mxu0
        %v910 = vadd.f32 0.0, %v909
        %v911 = vpop.f32.mrf.mxu0
        %v912 = vadd.f32 0.0, %v911
        %913 = vmatprep.mubr.bf16.mxu0 0
        %914 = vmatmul.mubr.bf16.gmra.mxu0 %v573
        %v915 = vpop.f32.mrf.mxu0
        %v916 = vadd.f32 0.0, %v915
        %v917 = vpop.f32.mrf.mxu0
        %v918 = vadd.f32 0.0, %v917
        %v919 = vpop.f32.mrf.mxu0
        %v920 = vadd.f32 0.0, %v919
        %v921 = vpop.f32.mrf.mxu0
        %v922 = vadd.f32 0.0, %v921
        %923 = vmatprep.mubr.bf16.mxu0 0
        %924 = vmatmul.mubr.bf16.gmra.mxu0 %v576
        %v925 = vpop.f32.mrf.mxu0
        %v926 = vadd.f32 0.0, %v925
        %v927 = vpop.f32.mrf.mxu0
        %v928 = vadd.f32 0.0, %v927
        %v929 = vpop.f32.mrf.mxu0
        %v930 = vadd.f32 0.0, %v929
        %v931 = vpop.f32.mrf.mxu0
        %v932 = vadd.f32 0.0, %v931
        %933 = vmatprep.mubr.bf16.mxu0 0
        %934 = vmatmul.mubr.bf16.gmra.mxu0 %v579
        %v935 = vpop.f32.mrf.mxu0
        %v936 = vadd.f32 0.0, %v935
        %v937 = vpop.f32.mrf.mxu0
        %v938 = vadd.f32 0.0, %v937
        %v939 = vpop.f32.mrf.mxu0
        %v940 = vpop.f32.mrf.mxu0
        %941 = vdwg.mxu0
        %942 = vmatprep.subr.bf16.mxu0 0
        %943 = vmatpush1.bf16.msra.mxu0 0
        %944 = vmatprep.subr.bf16.mxu0 0
        %945 = vmatpush1.bf16.msra.mxu0 0
        %946 = vmatprep.subr.bf16.mxu0 0
        %947 = vmatpush1.bf16.msra.mxu0 0
        %948 = vmatprep.subr.bf16.mxu0 0
        %949 = vmatpush1.bf16.msra.mxu0 0
        %950 = vmatprep.subr.bf16.mxu0 0
        %951 = vmatpush1.bf16.msra.mxu0 0
        %952 = vmatprep.subr.bf16.mxu0 0
        %953 = vmatpush1.bf16.msra.mxu0 0
        %954 = vmatprep.subr.bf16.mxu0 %v598
        %955 = vmatpush1.bf16.msra.mxu0 %v595
        %956 = vmatprep.subr.bf16.mxu0 %v513
        %957 = vmatpush1.bf16.msra.mxu0 %v512
        %958 = vmatprep.subr.bf16.mxu0 0
        %959 = vmatpush2.bf16.msra.mxu0 0
        %960 = vmatprep.subr.bf16.mxu0 0
        %961 = vmatpush2.bf16.msra.mxu0 0
        %962 = vmatprep.subr.bf16.mxu0 0
        %963 = vmatpush2.bf16.msra.mxu0 0
        %964 = vmatprep.subr.bf16.mxu0 0
        %965 = vmatpush2.bf16.msra.mxu0 0
        %966 = vmatprep.subr.bf16.mxu0 0
        %967 = vmatpush2.bf16.msra.mxu0 0
        %968 = vmatprep.subr.bf16.mxu0 0
        %969 = vmatpush2.bf16.msra.mxu0 0
        %970 = vmatprep.subr.bf16.mxu0 0
        %971 = vmatpush2.bf16.msra.mxu0 0
        %972 = vmatprep.subr.bf16.mxu0 0
        %973 = vmatpush2.bf16.msra.mxu0 0
        %974 = vmatprep.mubr.bf16.mxu0 0
        %975 = vmatmul.mubr.bf16.gmra.mxu0 %v540
        %v976 = vpop.f32.mrf.mxu0
        %v977 = vpop.f32.mrf.mxu0
        %v978 = vpop.f32.mrf.mxu0
        %v979 = vadd.f32 0.0, %v978
        %v980 = vpop.f32.mrf.mxu0
        %v981 = vadd.f32 0.0, %v980
        %982 = vmatprep.mubr.bf16.mxu0 0
        %983 = vmatmul.mubr.bf16.gmra.mxu0 %v543
        %v984 = vpop.f32.mrf.mxu0
        %v985 = vadd.f32 0.0, %v984
        %v986 = vpop.f32.mrf.mxu0
        %v987 = vadd.f32 0.0, %v986
        %v988 = vpop.f32.mrf.mxu0
        %v989 = vadd.f32 0.0, %v988
        %v990 = vpop.f32.mrf.mxu0
        %v991 = vadd.f32 0.0, %v990
        %992 = vmatprep.mubr.bf16.mxu0 0
        %993 = vmatmul.mubr.bf16.gmra.mxu0 %v546
        %v994 = vpop.f32.mrf.mxu0
        %v995 = vadd.f32 0.0, %v994
        %v996 = vpop.f32.mrf.mxu0
        %v997 = vadd.f32 0.0, %v996
        %v998 = vpop.f32.mrf.mxu0
        %v999 = vadd.f32 0.0, %v998
        %v1000 = vpop.f32.mrf.mxu0
        %v1001 = vadd.f32 0.0, %v1000
        %1002 = vmatprep.mubr.bf16.mxu0 0
        %1003 = vmatmul.mubr.bf16.gmra.mxu0 %v549
        %v1004 = vpop.f32.mrf.mxu0
        %v1005 = vadd.f32 0.0, %v1004
        %v1006 = vpop.f32.mrf.mxu0
        %v1007 = vadd.f32 0.0, %v1006
        %v1008 = vpop.f32.mrf.mxu0
        %v1009 = vpop.f32.mrf.mxu0
        %1010 = vmatprep.mubr.bf16.mxu0 0
        %1011 = vmatmul.mubr.bf16.gmra.mxu0 %v552
        %v1012 = vpop.f32.mrf.mxu0
        %v1013 = vadd.f32 0.0, %v1012
        %v1014 = vpop.f32.mrf.mxu0
        %v1015 = vadd.f32 0.0, %v1014
        %v1016 = vpop.f32.mrf.mxu0
        %v1017 = vadd.f32 0.0, %v1016
        %v1018 = vpop.f32.mrf.mxu0
        %v1019 = vadd.f32 0.0, %v1018
        %1020 = vmatprep.mubr.bf16.mxu0 0
        %1021 = vmatmul.mubr.bf16.gmra.mxu0 %v555
        %v1022 = vpop.f32.mrf.mxu0
        %v1023 = vadd.f32 0.0, %v1022
        %v1024 = vpop.f32.mrf.mxu0
        %v1025 = vadd.f32 0.0, %v1024
        %v1026 = vpop.f32.mrf.mxu0
        %v1027 = vadd.f32 0.0, %v1026
        %v1028 = vpop.f32.mrf.mxu0
        %v1029 = vadd.f32 0.0, %v1028
        %1030 = vmatprep.mubr.bf16.mxu0 0
        %1031 = vmatmul.mubr.bf16.gmra.mxu0 %v558
        %v1032 = vpop.f32.mrf.mxu0
        %v1033 = vadd.f32 0.0, %v1032
        %v1034 = vpop.f32.mrf.mxu0
        %v1035 = vadd.f32 0.0, %v1034
        %v1036 = vpop.f32.mrf.mxu0
        %v1037 = vadd.f32 0.0, %v1036
        %v1038 = vpop.f32.mrf.mxu0
        %v1039 = vadd.f32 0.0, %v1038
        %1040 = vmatprep.mubr.bf16.mxu0 0
        %1041 = vmatmul.mubr.bf16.gmra.mxu0 %v561
        %v1042 = vpop.f32.mrf.mxu0
        %v1043 = vadd.f32 0.0, %v1042
        %v1044 = vpop.f32.mrf.mxu0
        %v1045 = vadd.f32 0.0, %v1044
        %v1046 = vpop.f32.mrf.mxu0
        %v1047 = vadd.f32 0.0, %v1046
        %v1048 = vpop.f32.mrf.mxu0
        %v1049 = vadd.f32 0.0, %v1048
        %1050 = vmatprep.mubr.bf16.mxu0 0
        %1051 = vmatmul.mubr.bf16.gmra.mxu0 %v564
        %v1052 = vpop.f32.mrf.mxu0
        %v1053 = vadd.f32 0.0, %v1052
        %v1054 = vpop.f32.mrf.mxu0
        %v1055 = vadd.f32 0.0, %v1054
        %v1056 = vpop.f32.mrf.mxu0
        %v1057 = vadd.f32 0.0, %v1056
        %v1058 = vpop.f32.mrf.mxu0
        %v1059 = vadd.f32 0.0, %v1058
        %1060 = vmatprep.mubr.bf16.mxu0 0
        %1061 = vmatmul.mubr.bf16.gmra.mxu0 %v567
        %v1062 = vpop.f32.mrf.mxu0
        %v1063 = vadd.f32 0.0, %v1062
        %v1064 = vpop.f32.mrf.mxu0
        %v1065 = vadd.f32 0.0, %v1064
        %v1066 = vpop.f32.mrf.mxu0
        %v1067 = vadd.f32 0.0, %v1066
        %v1068 = vpop.f32.mrf.mxu0
        %v1069 = vadd.f32 0.0, %v1068
        %1070 = vmatprep.mubr.bf16.mxu0 0
        %1071 = vmatmul.mubr.bf16.gmra.mxu0 %v570
        %v1072 = vpop.f32.mrf.mxu0
        %v1073 = vpop.f32.mrf.mxu0
        %v1074 = vpop.f32.mrf.mxu0
        %v1075 = vadd.f32 0.0, %v1074
        %v1076 = vpop.f32.mrf.mxu0
        %v1077 = vadd.f32 0.0, %v1076
        %1078 = vmatprep.mubr.bf16.mxu0 0
        %1079 = vmatmul.mubr.bf16.gmra.mxu0 %v573
        %v1080 = vpop.f32.mrf.mxu0
        %v1081 = vadd.f32 0.0, %v1080
        %v1082 = vpop.f32.mrf.mxu0
        %v1083 = vadd.f32 0.0, %v1082
        %v1084 = vpop.f32.mrf.mxu0
        %v1085 = vadd.f32 0.0, %v1084
        %v1086 = vpop.f32.mrf.mxu0
        %v1087 = vadd.f32 0.0, %v1086
        %1088 = vmatprep.mubr.bf16.mxu0 0
        %1089 = vmatmul.mubr.bf16.gmra.mxu0 %v576
        %v1090 = vpop.f32.mrf.mxu0
        %v1091 = vadd.f32 0.0, %v1090
        %v1092 = vpop.f32.mrf.mxu0
        %v1093 = vadd.f32 0.0, %v1092
        %v1094 = vpop.f32.mrf.mxu0
        %v1095 = vadd.f32 0.0, %v1094
        %v1096 = vpop.f32.mrf.mxu0
        %v1097 = vadd.f32 0.0, %v1096
        %1098 = vmatprep.mubr.bf16.mxu0 0
        %1099 = vmatmul.mubr.bf16.gmra.mxu0 %v579
        %v1100 = vpop.f32.mrf.mxu0
        %v1101 = vadd.f32 0.0, %v1100
        %v1102 = vpop.f32.mrf.mxu0
        %v1103 = vadd.f32 0.0, %v1102
        %v1104 = vpop.f32.mrf.mxu0
        %v1105 = vpop.f32.mrf.mxu0
        %1106 = vdwg.mxu0
        %1107 = vmatprep.subr.bf16.mxu0 0
        %1108 = vmatpush1.bf16.msra.mxu0 0
        %1109 = vmatprep.subr.bf16.mxu0 0
        %1110 = vmatpush1.bf16.msra.mxu0 0
        %1111 = vmatprep.subr.bf16.mxu0 0
        %1112 = vmatpush1.bf16.msra.mxu0 0
        %1113 = vmatprep.subr.bf16.mxu0 0
        %1114 = vmatpush1.bf16.msra.mxu0 0
        %1115 = vmatprep.subr.bf16.mxu0 0
        %1116 = vmatpush1.bf16.msra.mxu0 0
        %1117 = vmatprep.subr.bf16.mxu0 0
        %1118 = vmatpush1.bf16.msra.mxu0 0
        %1119 = vmatprep.subr.bf16.mxu0 %v604
        %1120 = vmatpush1.bf16.msra.mxu0 %v601
        %1121 = vmatprep.subr.bf16.mxu0 %v515
        %1122 = vmatpush1.bf16.msra.mxu0 %v514
        %1123 = vmatprep.subr.bf16.mxu0 0
        %1124 = vmatpush2.bf16.msra.mxu0 0
        %1125 = vmatprep.subr.bf16.mxu0 0
        %1126 = vmatpush2.bf16.msra.mxu0 0
        %1127 = vmatprep.subr.bf16.mxu0 0
        %1128 = vmatpush2.bf16.msra.mxu0 0
        %1129 = vmatprep.subr.bf16.mxu0 0
        %1130 = vmatpush2.bf16.msra.mxu0 0
        %1131 = vmatprep.subr.bf16.mxu0 0
        %1132 = vmatpush2.bf16.msra.mxu0 0
        %1133 = vmatprep.subr.bf16.mxu0 0
        %1134 = vmatpush2.bf16.msra.mxu0 0
        %1135 = vmatprep.subr.bf16.mxu0 0
        %1136 = vmatpush2.bf16.msra.mxu0 0
        %1137 = vmatprep.subr.bf16.mxu0 0
        %1138 = vmatpush2.bf16.msra.mxu0 0
        %1139 = vmatprep.mubr.bf16.mxu0 0
        %1140 = vmatmul.mubr.bf16.gmra.mxu0 %v540
        %v1141 = vpop.f32.mrf.mxu0
        %v1142 = vpop.f32.mrf.mxu0
        %v1143 = vpop.f32.mrf.mxu0
        %v1144 = vadd.f32 0.0, %v1143
        %v1145 = vpop.f32.mrf.mxu0
        %v1146 = vadd.f32 0.0, %v1145
        %1147 = vmatprep.mubr.bf16.mxu0 0
        %1148 = vmatmul.mubr.bf16.gmra.mxu0 %v543
        %v1149 = vpop.f32.mrf.mxu0
        %v1150 = vadd.f32 0.0, %v1149
        %v1151 = vpop.f32.mrf.mxu0
        %v1152 = vadd.f32 0.0, %v1151
        %v1153 = vpop.f32.mrf.mxu0
        %v1154 = vadd.f32 0.0, %v1153
        %v1155 = vpop.f32.mrf.mxu0
        %v1156 = vadd.f32 0.0, %v1155
        %1157 = vmatprep.mubr.bf16.mxu0 0
        %1158 = vmatmul.mubr.bf16.gmra.mxu0 %v546
        %v1159 = vpop.f32.mrf.mxu0
        %v1160 = vadd.f32 0.0, %v1159
        %v1161 = vpop.f32.mrf.mxu0
        %v1162 = vadd.f32 0.0, %v1161
        %v1163 = vpop.f32.mrf.mxu0
        %v1164 = vadd.f32 0.0, %v1163
        %v1165 = vpop.f32.mrf.mxu0
        %v1166 = vadd.f32 0.0, %v1165
        %1167 = vmatprep.mubr.bf16.mxu0 0
        %1168 = vmatmul.mubr.bf16.gmra.mxu0 %v549
        %v1169 = vpop.f32.mrf.mxu0
        %v1170 = vadd.f32 0.0, %v1169
        %v1171 = vpop.f32.mrf.mxu0
        %v1172 = vadd.f32 0.0, %v1171
        %v1173 = vpop.f32.mrf.mxu0
        %v1174 = vpop.f32.mrf.mxu0
        %1175 = vmatprep.mubr.bf16.mxu0 0
        %1176 = vmatmul.mubr.bf16.gmra.mxu0 %v552
        %v1177 = vpop.f32.mrf.mxu0
        %v1178 = vadd.f32 0.0, %v1177
        %v1179 = vpop.f32.mrf.mxu0
        %v1180 = vadd.f32 0.0, %v1179
        %v1181 = vpop.f32.mrf.mxu0
        %v1182 = vadd.f32 0.0, %v1181
        %v1183 = vpop.f32.mrf.mxu0
        %v1184 = vadd.f32 0.0, %v1183
        %1185 = vmatprep.mubr.bf16.mxu0 0
        %1186 = vmatmul.mubr.bf16.gmra.mxu0 %v555
        %v1187 = vpop.f32.mrf.mxu0
        %v1188 = vadd.f32 0.0, %v1187
        %v1189 = vpop.f32.mrf.mxu0
        %v1190 = vadd.f32 0.0, %v1189
        %v1191 = vpop.f32.mrf.mxu0
        %v1192 = vadd.f32 0.0, %v1191
        %v1193 = vpop.f32.mrf.mxu0
        %v1194 = vadd.f32 0.0, %v1193
        %1195 = vmatprep.mubr.bf16.mxu0 0
        %1196 = vmatmul.mubr.bf16.gmra.mxu0 %v558
        %v1197 = vpop.f32.mrf.mxu0
        %v1198 = vadd.f32 0.0, %v1197
        %v1199 = vpop.f32.mrf.mxu0
        %v1200 = vadd.f32 0.0, %v1199
        %v1201 = vpop.f32.mrf.mxu0
        %v1202 = vadd.f32 0.0, %v1201
        %v1203 = vpop.f32.mrf.mxu0
        %v1204 = vadd.f32 0.0, %v1203
        %1205 = vmatprep.mubr.bf16.mxu0 0
        %1206 = vmatmul.mubr.bf16.gmra.mxu0 %v561
        %v1207 = vpop.f32.mrf.mxu0
        %v1208 = vpop.f32.mrf.mxu0
        %v1209 = vpop.f32.mrf.mxu0
        %v1210 = vadd.f32 0.0, %v1209
        %v1211 = vpop.f32.mrf.mxu0
        %v1212 = vadd.f32 0.0, %v1211
        %1213 = vmatprep.mubr.bf16.mxu0 0
        %1214 = vmatmul.mubr.bf16.gmra.mxu0 %v564
        %v1215 = vpop.f32.mrf.mxu0
        %v1216 = vadd.f32 0.0, %v1215
        %v1217 = vpop.f32.mrf.mxu0
        %v1218 = vadd.f32 0.0, %v1217
        %v1219 = vpop.f32.mrf.mxu0
        %v1220 = vadd.f32 0.0, %v1219
        %v1221 = vpop.f32.mrf.mxu0
        %v1222 = vadd.f32 0.0, %v1221
        %1223 = vmatprep.mubr.bf16.mxu0 0
        %1224 = vmatmul.mubr.bf16.gmra.mxu0 %v567
        %v1225 = vpop.f32.mrf.mxu0
        %v1226 = vadd.f32 0.0, %v1225
        %v1227 = vpop.f32.mrf.mxu0
        %v1228 = vadd.f32 0.0, %v1227
        %v1229 = vpop.f32.mrf.mxu0
        %v1230 = vadd.f32 0.0, %v1229
        %v1231 = vpop.f32.mrf.mxu0
        %v1232 = vadd.f32 0.0, %v1231
        %1233 = vmatprep.mubr.bf16.mxu0 0
        %1234 = vmatmul.mubr.bf16.gmra.mxu0 %v570
        %v1235 = vpop.f32.mrf.mxu0
        %v1236 = vadd.f32 0.0, %v1235
        %v1237 = vpop.f32.mrf.mxu0
        %v1238 = vadd.f32 0.0, %v1237
        %v1239 = vpop.f32.mrf.mxu0
        %v1240 = vadd.f32 0.0, %v1239
        %v1241 = vpop.f32.mrf.mxu0
        %v1242 = vadd.f32 0.0, %v1241
        %1243 = vmatprep.mubr.bf16.mxu0 0
        %1244 = vmatmul.mubr.bf16.gmra.mxu0 %v573
        %v1245 = vpop.f32.mrf.mxu0
        %v1246 = vadd.f32 0.0, %v1245
        %v1247 = vpop.f32.mrf.mxu0
        %v1248 = vadd.f32 0.0, %v1247
        %v1249 = vpop.f32.mrf.mxu0
        %v1250 = vadd.f32 0.0, %v1249
        %v1251 = vpop.f32.mrf.mxu0
        %v1252 = vadd.f32 0.0, %v1251
        %1253 = vmatprep.mubr.bf16.mxu0 0
        %1254 = vmatmul.mubr.bf16.gmra.mxu0 %v576
        %v1255 = vpop.f32.mrf.mxu0
        %v1256 = vadd.f32 0.0, %v1255
        %v1257 = vpop.f32.mrf.mxu0
        %v1258 = vadd.f32 0.0, %v1257
        %v1259 = vpop.f32.mrf.mxu0
        %v1260 = vadd.f32 0.0, %v1259
        %v1261 = vpop.f32.mrf.mxu0
        %v1262 = vadd.f32 0.0, %v1261
        %1263 = vmatprep.mubr.bf16.mxu0 0
        %1264 = vmatmul.mubr.bf16.gmra.mxu0 %v579
        %v1265 = vpop.f32.mrf.mxu0
        %v1266 = vadd.f32 0.0, %v1265
        %v1267 = vpop.f32.mrf.mxu0
        %v1268 = vadd.f32 0.0, %v1267
        %v1269 = vpop.f32.mrf.mxu0
        %v1270 = vpop.f32.mrf.mxu0
        %1271 = vdwg.mxu0
        %1272 = vmatprep.subr.bf16.mxu0 0
        %1273 = vmatpush1.bf16.msra.mxu0 0
        %1274 = vmatprep.subr.bf16.mxu0 0
        %1275 = vmatpush1.bf16.msra.mxu0 0
        %1276 = vmatprep.subr.bf16.mxu0 0
        %1277 = vmatpush1.bf16.msra.mxu0 0
        %1278 = vmatprep.subr.bf16.mxu0 0
        %1279 = vmatpush1.bf16.msra.mxu0 0
        %1280 = vmatprep.subr.bf16.mxu0 0
        %1281 = vmatpush1.bf16.msra.mxu0 0
        %1282 = vmatprep.subr.bf16.mxu0 0
        %1283 = vmatpush1.bf16.msra.mxu0 0
        %1284 = vmatprep.subr.bf16.mxu0 %v610
        %1285 = vmatpush1.bf16.msra.mxu0 %v607
        %1286 = vmatprep.subr.bf16.mxu0 %v517
        %1287 = vmatpush1.bf16.msra.mxu0 %v516
        %1288 = vmatprep.subr.bf16.mxu0 0
        %1289 = vmatpush2.bf16.msra.mxu0 0
        %1290 = vmatprep.subr.bf16.mxu0 0
        %1291 = vmatpush2.bf16.msra.mxu0 0
        %1292 = vmatprep.subr.bf16.mxu0 0
        %1293 = vmatpush2.bf16.msra.mxu0 0
        %1294 = vmatprep.subr.bf16.mxu0 0
        %1295 = vmatpush2.bf16.msra.mxu0 0
        %1296 = vmatprep.subr.bf16.mxu0 0
        %1297 = vmatpush2.bf16.msra.mxu0 0
        %1298 = vmatprep.subr.bf16.mxu0 0
        %1299 = vmatpush2.bf16.msra.mxu0 0
        %1300 = vmatprep.subr.bf16.mxu0 0
        %1301 = vmatpush2.bf16.msra.mxu0 0
        %1302 = vmatprep.subr.bf16.mxu0 0
        %1303 = vmatpush2.bf16.msra.mxu0 0
        %1304 = vmatprep.mubr.bf16.mxu0 0
        %1305 = vmatmul.mubr.bf16.gmra.mxu0 %v540
        %v1306 = vpop.f32.mrf.mxu0
        %v1307 = vpop.f32.mrf.mxu0
        %v1308 = vpop.f32.mrf.mxu0
        %v1309 = vadd.f32 0.0, %v1308
        %v1310 = vpop.f32.mrf.mxu0
        %v1311 = vadd.f32 0.0, %v1310
        %1312 = vmatprep.mubr.bf16.mxu0 0
        %1313 = vmatmul.mubr.bf16.gmra.mxu0 %v543
        %v1314 = vpop.f32.mrf.mxu0
        %v1315 = vadd.f32 0.0, %v1314
        %v1316 = vpop.f32.mrf.mxu0
        %v1317 = vadd.f32 0.0, %v1316
        %v1318 = vpop.f32.mrf.mxu0
        %v1319 = vadd.f32 0.0, %v1318
        %v1320 = vpop.f32.mrf.mxu0
        %v1321 = vadd.f32 0.0, %v1320
        %1322 = vmatprep.mubr.bf16.mxu0 0
        %1323 = vmatmul.mubr.bf16.gmra.mxu0 %v546
        %v1324 = vpop.f32.mrf.mxu0
        %v1325 = vadd.f32 0.0, %v1324
        %v1326 = vpop.f32.mrf.mxu0
        %v1327 = vadd.f32 0.0, %v1326
        %v1328 = vpop.f32.mrf.mxu0
        %v1329 = vadd.f32 0.0, %v1328
        %v1330 = vpop.f32.mrf.mxu0
        %v1331 = vadd.f32 0.0, %v1330
        %1332 = vmatprep.mubr.bf16.mxu0 0
        %1333 = vmatmul.mubr.bf16.gmra.mxu0 %v549
        %v1334 = vpop.f32.mrf.mxu0
        %v1335 = vadd.f32 0.0, %v1334
        %v1336 = vpop.f32.mrf.mxu0
        %v1337 = vadd.f32 0.0, %v1336
        %v1338 = vpop.f32.mrf.mxu0
        %v1339 = vpop.f32.mrf.mxu0
        %1340 = vmatprep.mubr.bf16.mxu0 0
        %1341 = vmatmul.mubr.bf16.gmra.mxu0 %v552
        %v1342 = vpop.f32.mrf.mxu0
        %v1343 = vadd.f32 0.0, %v1342
        %v1344 = vpop.f32.mrf.mxu0
        %v1345 = vadd.f32 0.0, %v1344
        %v1346 = vpop.f32.mrf.mxu0
        %v1347 = vadd.f32 0.0, %v1346
        %v1348 = vpop.f32.mrf.mxu0
        %v1349 = vadd.f32 0.0, %v1348
        %1350 = vmatprep.mubr.bf16.mxu0 0
        %1351 = vmatmul.mubr.bf16.gmra.mxu0 %v555
        %v1352 = vpop.f32.mrf.mxu0
        %v1353 = vadd.f32 0.0, %v1352
        %v1354 = vpop.f32.mrf.mxu0
        %v1355 = vadd.f32 0.0, %v1354
        %v1356 = vpop.f32.mrf.mxu0
        %v1357 = vadd.f32 0.0, %v1356
        %v1358 = vpop.f32.mrf.mxu0
        %v1359 = vadd.f32 0.0, %v1358
        %1360 = vmatprep.mubr.bf16.mxu0 0
        %1361 = vmatmul.mubr.bf16.gmra.mxu0 %v558
        %v1362 = vpop.f32.mrf.mxu0
        %v1363 = vadd.f32 0.0, %v1362
        %v1364 = vpop.f32.mrf.mxu0
        %v1365 = vadd.f32 0.0, %v1364
        %v1366 = vpop.f32.mrf.mxu0
        %v1367 = vadd.f32 0.0, %v1366
        %v1368 = vpop.f32.mrf.mxu0
        %v1369 = vadd.f32 0.0, %v1368
        %1370 = vmatprep.mubr.bf16.mxu0 0
        %1371 = vmatmul.mubr.bf16.gmra.mxu0 %v561
        %v1372 = vpop.f32.mrf.mxu0
        %v1373 = vpop.f32.mrf.mxu0
        %v1374 = vpop.f32.mrf.mxu0
        %v1375 = vadd.f32 0.0, %v1374
        %v1376 = vpop.f32.mrf.mxu0
        %v1377 = vadd.f32 0.0, %v1376
        %1378 = vmatprep.mubr.bf16.mxu0 0
        %1379 = vmatmul.mubr.bf16.gmra.mxu0 %v564
        %v1380 = vpop.f32.mrf.mxu0
        %v1381 = vadd.f32 0.0, %v1380
        %v1382 = vpop.f32.mrf.mxu0
        %v1383 = vadd.f32 0.0, %v1382
        %v1384 = vpop.f32.mrf.mxu0
        %v1385 = vadd.f32 0.0, %v1384
        %v1386 = vpop.f32.mrf.mxu0
        %v1387 = vadd.f32 0.0, %v1386
        %1388 = vmatprep.mubr.bf16.mxu0 0
        %1389 = vmatmul.mubr.bf16.gmra.mxu0 %v567
        %v1390 = vpop.f32.mrf.mxu0
        %v1391 = vadd.f32 0.0, %v1390
        %v1392 = vpop.f32.mrf.mxu0
        %v1393 = vadd.f32 0.0, %v1392
        %v1394 = vpop.f32.mrf.mxu0
        %v1395 = vadd.f32 0.0, %v1394
        %v1396 = vpop.f32.mrf.mxu0
        %v1397 = vadd.f32 0.0, %v1396
        %1398 = vmatprep.mubr.bf16.mxu0 0
        %1399 = vmatmul.mubr.bf16.gmra.mxu0 %v570
        %v1400 = vpop.f32.mrf.mxu0
        %v1401 = vadd.f32 0.0, %v1400
        %v1402 = vpop.f32.mrf.mxu0
        %v1403 = vadd.f32 0.0, %v1402
        %v1404 = vpop.f32.mrf.mxu0
        %v1405 = vpop.f32.mrf.mxu0
        %1406 = vmatprep.mubr.bf16.mxu0 0
        %1407 = vmatmul.mubr.bf16.gmra.mxu0 %v573
        %v1408 = vpop.f32.mrf.mxu0
        %v1409 = vadd.f32 0.0, %v1408
        %v1410 = vpop.f32.mrf.mxu0
        %v1411 = vadd.f32 0.0, %v1410
        %v1412 = vpop.f32.mrf.mxu0
        %v1413 = vadd.f32 0.0, %v1412
        %v1414 = vpop.f32.mrf.mxu0
        %v1415 = vadd.f32 0.0, %v1414
        %1416 = vmatprep.mubr.bf16.mxu0 0
        %1417 = vmatmul.mubr.bf16.gmra.mxu0 %v576
        %v1418 = vpop.f32.mrf.mxu0
        %v1419 = vadd.f32 0.0, %v1418
        %v1420 = vpop.f32.mrf.mxu0
        %v1421 = vadd.f32 0.0, %v1420
        %v1422 = vpop.f32.mrf.mxu0
        %v1423 = vadd.f32 0.0, %v1422
        %v1424 = vpop.f32.mrf.mxu0
        %v1425 = vadd.f32 0.0, %v1424
        %1426 = vmatprep.mubr.bf16.mxu0 0
        %1427 = vmatmul.mubr.bf16.gmra.mxu0 %v579
        %v1428 = vpop.f32.mrf.mxu0
        %v1429 = vadd.f32 0.0, %v1428
        %v1430 = vpop.f32.mrf.mxu0
        %v1431 = vadd.f32 0.0, %v1430
        %v1432 = vpop.f32.mrf.mxu0
        %v1433 = vadd.f32 0.0, %v1432
        %v1434 = vpop.f32.mrf.mxu0
        %v1435 = vadd.f32 0.0, %v1434
        %1436 = vdwg.mxu0
        %v1437 = vadd.f32 %v647, %v844
        %v1438 = vadd.f32 %v649, %v846
        %v1439 = vadd.f32 %v651, %v850
        %v1440 = vadd.f32 %v653, %v852
        %v1441 = vadd.f32 %v657, %v854
        %v1442 = vadd.f32 %v659, %v856
        %v1443 = vadd.f32 %v661, %v860
        %v1444 = vadd.f32 %v663, %v862
        %v1445 = vadd.f32 %v667, %v864
        %v1446 = vadd.f32 %v669, %v866
        %v1447 = vadd.f32 %v671, %v870
        %v1448 = vadd.f32 %v673, %v872
        %v1449 = vadd.f32 %v1437, %v1043
        %v1450 = vadd.f32 %v1438, %v1045
        %v1451 = vadd.f32 %v1439, %v1047
        %v1452 = vadd.f32 %v1440, %v1049
        %v1453 = vadd.f32 %v1441, %v1053
        %v1454 = vadd.f32 %v1442, %v1055
        %v1455 = vadd.f32 %v1443, %v1057
        %v1456 = vadd.f32 %v1444, %v1059
        %v1457 = vadd.f32 %v1445, %v1063
        %v1458 = vadd.f32 %v1446, %v1065
        %v1459 = vadd.f32 %v1447, %v1067
        %v1460 = vadd.f32 %v1448, %v1069
        %v1461 = vadd.f32 %v1449, %v1240
        %v1462 = vadd.f32 %v1450, %v1242
        %v1463 = vadd.f32 %v1451, %v1246
        %v1464 = vadd.f32 %v1452, %v1248
        %v1465 = vadd.f32 %v1453, %v1250
        %v1466 = vadd.f32 %v1454, %v1252
        %v1467 = vadd.f32 %v1455, %v1256
        %v1468 = vadd.f32 %v1456, %v1258
        %v1469 = vadd.f32 %v1457, %v1260
        %v1470 = vadd.f32 %v1458, %v1262
        %v1471 = vadd.f32 %v1459, %v1266
        %v1472 = vadd.f32 %v1460, %v1268
        %v1473 = vadd.f32 %v1461, %v1309
        %v1474 = vadd.f32 %v1462, %v1311
        %v1475 = vadd.f32 %v1463, %v1315
        %v1476 = vadd.f32 %v1464, %v1317
        %v1477 = vadd.f32 %v1465, %v1319
        %v1478 = vadd.f32 %v1466, %v1321
        %v1479 = vadd.f32 %v1467, %v1325
        %v1480 = vadd.f32 %v1468, %v1327
        %v1481 = vadd.f32 %v1469, %v1329
        %v1482 = vadd.f32 %v1470, %v1331
        %v1483 = vadd.f32 %v1471, %v1335
        %v1484 = vadd.f32 %v1472, %v1337
        %v1485 = vadd.f32 %v679, %v878
        %v1486 = vadd.f32 %v681, %v880
        %v1487 = vadd.f32 %v685, %v882
        %v1488 = vadd.f32 %v687, %v884
        %v1489 = vadd.f32 %v689, %v888
        %v1490 = vadd.f32 %v691, %v890
        %v1491 = vadd.f32 %v695, %v892
        %v1492 = vadd.f32 %v697, %v894
        %v1493 = vadd.f32 %v699, %v898
        %v1494 = vadd.f32 %v701, %v900
        %v1495 = vadd.f32 %v705, %v902
        %v1496 = vadd.f32 %v707, %v904
        %v1497 = vadd.f32 %v1485, %v1075
        %v1498 = vadd.f32 %v1486, %v1077
        %v1499 = vadd.f32 %v1487, %v1081
        %v1500 = vadd.f32 %v1488, %v1083
        %v1501 = vadd.f32 %v1489, %v1085
        %v1502 = vadd.f32 %v1490, %v1087
        %v1503 = vadd.f32 %v1491, %v1091
        %v1504 = vadd.f32 %v1492, %v1093
        %v1505 = vadd.f32 %v1493, %v1095
        %v1506 = vadd.f32 %v1494, %v1097
        %v1507 = vadd.f32 %v1495, %v1101
        %v1508 = vadd.f32 %v1496, %v1103
        %v1509 = vadd.f32 %v1497, %v1144
        %v1510 = vadd.f32 %v1498, %v1146
        %v1511 = vadd.f32 %v1499, %v1150
        %v1512 = vadd.f32 %v1500, %v1152
        %v1513 = vadd.f32 %v1501, %v1154
        %v1514 = vadd.f32 %v1502, %v1156
        %v1515 = vadd.f32 %v1503, %v1160
        %v1516 = vadd.f32 %v1504, %v1162
        %v1517 = vadd.f32 %v1505, %v1164
        %v1518 = vadd.f32 %v1506, %v1166
        %v1519 = vadd.f32 %v1507, %v1170
        %v1520 = vadd.f32 %v1508, %v1172
        %v1521 = vadd.f32 %v1509, %v1343
        %v1522 = vadd.f32 %v1510, %v1345
        %v1523 = vadd.f32 %v1511, %v1347
        %v1524 = vadd.f32 %v1512, %v1349
        %v1525 = vadd.f32 %v1513, %v1353
        %v1526 = vadd.f32 %v1514, %v1355
        %v1527 = vadd.f32 %v1515, %v1357
        %v1528 = vadd.f32 %v1516, %v1359
        %v1529 = vadd.f32 %v1517, %v1363
        %v1530 = vadd.f32 %v1518, %v1365
        %v1531 = vadd.f32 %v1519, %v1367
        %v1532 = vadd.f32 %v1520, %v1369
        %v1533 = vadd.f32 %v713, %v910
        %v1534 = vadd.f32 %v715, %v912
        %v1535 = vadd.f32 %v717, %v916
        %v1536 = vadd.f32 %v719, %v918
        %v1537 = vadd.f32 %v723, %v920
        %v1538 = vadd.f32 %v725, %v922
        %v1539 = vadd.f32 %v727, %v926
        %v1540 = vadd.f32 %v729, %v928
        %v1541 = vadd.f32 %v733, %v930
        %v1542 = vadd.f32 %v735, %v932
        %v1543 = vadd.f32 %v737, %v936
        %v1544 = vadd.f32 %v739, %v938
        %v1545 = vadd.f32 %v1533, %v979
        %v1546 = vadd.f32 %v1534, %v981
        %v1547 = vadd.f32 %v1535, %v985
        %v1548 = vadd.f32 %v1536, %v987
        %v1549 = vadd.f32 %v1537, %v989
        %v1550 = vadd.f32 %v1538, %v991
        %v1551 = vadd.f32 %v1539, %v995
        %v1552 = vadd.f32 %v1540, %v997
        %v1553 = vadd.f32 %v1541, %v999
        %v1554 = vadd.f32 %v1542, %v1001
        %v1555 = vadd.f32 %v1543, %v1005
        %v1556 = vadd.f32 %v1544, %v1007
        %v1557 = vadd.f32 %v1545, %v1178
        %v1558 = vadd.f32 %v1546, %v1180
        %v1559 = vadd.f32 %v1547, %v1182
        %v1560 = vadd.f32 %v1548, %v1184
        %v1561 = vadd.f32 %v1549, %v1188
        %v1562 = vadd.f32 %v1550, %v1190
        %v1563 = vadd.f32 %v1551, %v1192
        %v1564 = vadd.f32 %v1552, %v1194
        %v1565 = vadd.f32 %v1553, %v1198
        %v1566 = vadd.f32 %v1554, %v1200
        %v1567 = vadd.f32 %v1555, %v1202
        %v1568 = vadd.f32 %v1556, %v1204
        %v1569 = vadd.f32 %v1557, %v1375
        %v1570 = vadd.f32 %v1558, %v1377
        %v1571 = vadd.f32 %v1559, %v1381
        %v1572 = vadd.f32 %v1560, %v1383
        %v1573 = vadd.f32 %v1561, %v1385
        %v1574 = vadd.f32 %v1562, %v1387
        %v1575 = vadd.f32 %v1563, %v1391
        %v1576 = vadd.f32 %v1564, %v1393
        %v1577 = vadd.f32 %v1565, %v1395
        %v1578 = vadd.f32 %v1566, %v1397
        %v1579 = vadd.f32 %v1567, %v1401
        %v1580 = vadd.f32 %v1568, %v1403
        %v1581 = vadd.f32 %v745, %v814
        %v1582 = vadd.f32 %v747, %v816
        %v1583 = vadd.f32 %v751, %v820
        %v1584 = vadd.f32 %v753, %v822
        %v1585 = vadd.f32 %v755, %v824
        %v1586 = vadd.f32 %v757, %v826
        %v1587 = vadd.f32 %v761, %v830
        %v1588 = vadd.f32 %v763, %v832
        %v1589 = vadd.f32 %v765, %v834
        %v1590 = vadd.f32 %v767, %v836
        %v1591 = vadd.f32 %v771, %v840
        %v1592 = vadd.f32 %v773, %v842
        %v1593 = vadd.f32 %v1581, %v1013
        %v1594 = vadd.f32 %v1582, %v1015
        %v1595 = vadd.f32 %v1583, %v1017
        %v1596 = vadd.f32 %v1584, %v1019
        %v1597 = vadd.f32 %v1585, %v1023
        %v1598 = vadd.f32 %v1586, %v1025
        %v1599 = vadd.f32 %v1587, %v1027
        %v1600 = vadd.f32 %v1588, %v1029
        %v1601 = vadd.f32 %v1589, %v1033
        %v1602 = vadd.f32 %v1590, %v1035
        %v1603 = vadd.f32 %v1591, %v1037
        %v1604 = vadd.f32 %v1592, %v1039
        %v1605 = vadd.f32 %v1593, %v1210
        %v1606 = vadd.f32 %v1594, %v1212
        %v1607 = vadd.f32 %v1595, %v1216
        %v1608 = vadd.f32 %v1596, %v1218
        %v1609 = vadd.f32 %v1597, %v1220
        %v1610 = vadd.f32 %v1598, %v1222
        %v1611 = vadd.f32 %v1599, %v1226
        %v1612 = vadd.f32 %v1600, %v1228
        %v1613 = vadd.f32 %v1601, %v1230
        %v1614 = vadd.f32 %v1602, %v1232
        %v1615 = vadd.f32 %v1603, %v1236
        %v1616 = vadd.f32 %v1604, %v1238
        %v1617 = vadd.f32 %v1605, %v1409
        %v1618 = vadd.f32 %v1606, %v1411
        %v1619 = vadd.f32 %v1607, %v1413
        %v1620 = vadd.f32 %v1608, %v1415
        %v1621 = vadd.f32 %v1609, %v1419
        %v1622 = vadd.f32 %v1610, %v1421
        %v1623 = vadd.f32 %v1611, %v1423
        %v1624 = vadd.f32 %v1612, %v1425
        %v1625 = vadd.f32 %v1613, %v1429
        %v1626 = vadd.f32 %v1614, %v1431
        %v1627 = vadd.f32 %v1615, %v1433
        %v1628 = vadd.f32 %v1616, %v1435
        %v1629 = vld [vmem:[%s2] sm:$0x1]
        %v1630 = vmax.f32 %v1473, %v1474
        %v1631 = vmax.f32 %v1475, %v1476
        %v1632 = vmax.f32 %v1477, %v1478
        %v1633 = vmax.f32 %v1479, %v1480
        %v1634 = vmax.f32 %v1481, %v1482
        %v1635 = vmax.f32 %v1483, %v1484
        %v1636 = vmax.f32 %v1521, %v1522
        %v1637 = vmax.f32 %v1523, %v1524
        %v1638 = vmax.f32 %v1525, %v1526
        %v1639 = vmax.f32 %v1527, %v1528
        %v1640 = vmax.f32 %v1529, %v1530
        %v1641 = vmax.f32 %v1531, %v1532
        %v1642 = vmax.f32 %v1630, %v1636
        %v1643 = vmax.f32 %v1631, %v1637
        %v1644 = vmax.f32 %v1632, %v1638
        %v1645 = vmax.f32 %v1633, %v1639
        %v1646 = vmax.f32 %v1634, %v1640
        %v1647 = vmax.f32 %v1635, %v1641
        %v1649 = vlaneseq
        %v1650 = vshrl.u32 %v1649, 7
        %v1651 = vsub.s32 0, %v1650
        %v1652 = vrot.slane %v1629, %v1651
        %v1654 = vadd.f32 %v1642, %v1652
        %v1655 = vadd.f32 %v1643, %v1652
        %v1656 = vadd.f32 %v1644, %v1652
        %v1657 = vadd.f32 %v1645, %v1652
        %v1658 = vadd.f32 %v1646, %v1652
        %v1659 = vadd.f32 %v1647, %v1652
        %v1660 = vmax.f32 %v1654, 0.0
        %v1661 = vmax.f32 %v1655, 0.0
        %v1662 = vmax.f32 %v1656, 0.0
        %v1663 = vmax.f32 %v1657, 0.0
        %v1664 = vmax.f32 %v1658, 0.0
        %v1665 = vmax.f32 %v1659, 0.0
        %v1666 = vmax.f32 %v1569, %v1570
        %v1667 = vmax.f32 %v1571, %v1572
        %v1668 = vmax.f32 %v1573, %v1574
        %v1669 = vmax.f32 %v1575, %v1576
        %v1670 = vmax.f32 %v1577, %v1578
        %v1671 = vmax.f32 %v1579, %v1580
        %v1672 = vmax.f32 %v1617, %v1618
        %v1673 = vmax.f32 %v1619, %v1620
        %v1674 = vmax.f32 %v1621, %v1622
        %v1675 = vmax.f32 %v1623, %v1624
        %v1676 = vmax.f32 %v1625, %v1626
        %v1677 = vmax.f32 %v1627, %v1628
        %v1678 = vmax.f32 %v1666, %v1672
        %v1679 = vmax.f32 %v1667, %v1673
        %v1680 = vmax.f32 %v1668, %v1674
        %v1681 = vmax.f32 %v1669, %v1675
        %v1682 = vmax.f32 %v1670, %v1676
        %v1683 = vmax.f32 %v1671, %v1677
        %v1684 = vadd.f32 %v1678, %v1652
        %v1685 = vadd.f32 %v1679, %v1652
        %v1686 = vadd.f32 %v1680, %v1652
        %v1687 = vadd.f32 %v1681, %v1652
        %v1688 = vadd.f32 %v1682, %v1652
        %v1689 = vadd.f32 %v1683, %v1652
        %v1690 = vmax.f32 %v1684, 0.0
        %v1691 = vmax.f32 %v1685, 0.0
        %v1692 = vmax.f32 %v1686, 0.0
        %v1693 = vmax.f32 %v1687, 0.0
        %v1694 = vmax.f32 %v1688, 0.0
        %v1695 = vmax.f32 %v1689, 0.0
        %v1696 = vpack.c.bf16 %v1661, %v1660
        %v1697 = vpack.c.bf16 %v1663, %v1662
        %v1698 = vpack.c.bf16 %v1665, %v1664
        %v1699 = vpack.c.bf16 %v1691, %v1690
        %v1700 = vpack.c.bf16 %v1693, %v1692
        %v1701 = vpack.c.bf16 %v1695, %v1694
        %v1702 = vld [vmem:[%s3] sm:$0xff]
        %v1703 = vld [vmem:[%s3 + $0x8] sm:$0xff]
        %v1704 = vld [vmem:[%s3 + $0x10] sm:$0xf]
        %v1705 = vld [vmem:[%s3 + $0x14] sm:$0xff]
        %v1706 = vld [vmem:[%s3 + $0x1c] sm:$0xff]
        %v1707 = vld [vmem:[%s3 + $0x24] sm:$0xf]
        %v1708 = vld [vmem:[%s3 + $0x28] sm:$0xff]
        %v1709 = vld [vmem:[%s3 + $0x30] sm:$0xff]
        %v1710 = vld [vmem:[%s3 + $0x38] sm:$0xf]
        %v1711 = vld [vmem:[%s3 + $0x3c] sm:$0xff]
        %v1712 = vld [vmem:[%s3 + $0x44] sm:$0xff]
        %v1713 = vld [vmem:[%s3 + $0x4c] sm:$0xf]
        %v1714 = vld [vmem:[%s3 + $0x50] sm:$0xff]
        %v1715 = vld [vmem:[%s3 + $0x58] sm:$0xff]
        %v1716 = vld [vmem:[%s3 + $0x60] sm:$0xf]
        %v1717 = vld [vmem:[%s3 + $0x64] sm:$0xff]
        %v1718 = vld [vmem:[%s3 + $0x6c] sm:$0xff]
        %v1719 = vld [vmem:[%s3 + $0x74] sm:$0xf]
        %v1720 = vld [vmem:[%s3 + $0x78] sm:$0xff]
        %v1721 = vld [vmem:[%s3 + $0x80] sm:$0xff]
        %v1722 = vld [vmem:[%s3 + $0x88] sm:$0xf]
        %v1723 = vld [vmem:[%s3 + $0x8c] sm:$0xff]
        %v1724 = vld [vmem:[%s3 + $0x94] sm:$0xff]
        %v1725 = vld [vmem:[%s3 + $0x9c] sm:$0xf]
        %v1726 = vld [vmem:[%s3 + $0xa0] sm:$0xff]
        %v1727 = vld [vmem:[%s3 + $0xa8] sm:$0xff]
        %v1728 = vld [vmem:[%s3 + $0xb0] sm:$0xf]
        %v1729 = vld [vmem:[%s3 + $0xb4] sm:$0xff]
        %v1730 = vld [vmem:[%s3 + $0xbc] sm:$0xff]
        %v1731 = vld [vmem:[%s3 + $0xc4] sm:$0xf]
        %v1732 = vld [vmem:[%s3 + $0xc8] sm:$0xff]
        %v1733 = vld [vmem:[%s3 + $0xd0] sm:$0xff]
        %v1734 = vld [vmem:[%s3 + $0xd8] sm:$0xf]
        %v1735 = vld [vmem:[%s3 + $0xdc] sm:$0xff]
        %v1736 = vld [vmem:[%s3 + $0xe4] sm:$0xff]
        %v1737 = vld [vmem:[%s3 + $0xec] sm:$0xf]
        %v1774 = vunpack.c.l.b16 %v1702
        %v1775 = vunpack.c.h.b16 %v1702
        %v1776 = vunpack.c.l.b16 %v1703
        %v1777 = vunpack.c.h.b16 %v1703
        %v1778 = vunpack.c.l.b16 %v1704
        %v1779 = vunpack.c.l.b16 %v1705
        %v1780 = vunpack.c.h.b16 %v1705
        %v1781 = vunpack.c.l.b16 %v1706
        %v1782 = vunpack.c.h.b16 %v1706
        %v1783 = vunpack.c.l.b16 %v1707
        %v1784 = vunpack.c.l.b16 %v1708
        %v1785 = vunpack.c.h.b16 %v1708
        %v1786 = vunpack.c.l.b16 %v1709
        %v1787 = vunpack.c.h.b16 %v1709
        %v1788 = vunpack.c.l.b16 %v1710
        %v1789 = vunpack.c.l.b16 %v1711
        %v1790 = vunpack.c.h.b16 %v1711
        %v1791 = vunpack.c.l.b16 %v1712
        %v1792 = vunpack.c.h.b16 %v1712
        %v1793 = vunpack.c.l.b16 %v1713
        %v1794 = vunpack.c.l.b16 %v1714
        %v1795 = vunpack.c.h.b16 %v1714
        %v1796 = vunpack.c.l.b16 %v1715
        %v1797 = vunpack.c.h.b16 %v1715
        %v1798 = vunpack.c.l.b16 %v1716
        %v1799 = vunpack.c.l.b16 %v1717
        %v1800 = vunpack.c.h.b16 %v1717
        %v1801 = vunpack.c.l.b16 %v1718
        %v1802 = vunpack.c.h.b16 %v1718
        %v1803 = vunpack.c.l.b16 %v1719
        %v1804 = vunpack.c.l.b16 %v1720
        %v1805 = vunpack.c.h.b16 %v1720
        %v1806 = vunpack.c.l.b16 %v1721
        %v1807 = vunpack.c.h.b16 %v1721
        %v1808 = vunpack.c.l.b16 %v1722
        %v1809 = vunpack.c.l.b16 %v1723
        %v1810 = vunpack.c.h.b16 %v1723
        %v1811 = vunpack.c.l.b16 %v1724
        %v1812 = vunpack.c.h.b16 %v1724
        %v1813 = vunpack.c.l.b16 %v1725
        %v1814 = vunpack.c.l.b16 %v1726
        %v1815 = vunpack.c.h.b16 %v1726
        %v1816 = vunpack.c.l.b16 %v1727
        %v1817 = vunpack.c.h.b16 %v1727
        %v1818 = vunpack.c.l.b16 %v1728
        %v1819 = vunpack.c.l.b16 %v1729
        %v1820 = vunpack.c.h.b16 %v1729
        %v1821 = vunpack.c.l.b16 %v1730
        %v1822 = vunpack.c.h.b16 %v1730
        %v1823 = vunpack.c.l.b16 %v1731
        %v1824 = vunpack.c.l.b16 %v1732
        %v1825 = vunpack.c.h.b16 %v1732
        %v1826 = vunpack.c.l.b16 %v1733
        %v1827 = vunpack.c.h.b16 %v1733
        %v1828 = vunpack.c.l.b16 %v1734
        %v1829 = vunpack.c.l.b16 %v1735
        %v1830 = vunpack.c.h.b16 %v1735
        %v1831 = vunpack.c.l.b16 %v1736
        %v1832 = vunpack.c.h.b16 %v1736
        %v1833 = vunpack.c.l.b16 %v1737
        %v1834 = vpack.c.b16 %v1779, %v1774
        %v1835 = vpack.c.b16 %v1780, %v1775
        %v1836 = vpack.c.b16 %v1781, %v1776
        %v1837 = vpack.c.b16 %v1782, %v1777
        %v1838 = vpack.c.b16 %v1783, %v1778
        %v1839 = vpack.c.b16 %v1789, %v1784
        %v1840 = vpack.c.b16 %v1790, %v1785
        %v1841 = vpack.c.b16 %v1791, %v1786
        %v1842 = vpack.c.b16 %v1792, %v1787
        %v1843 = vpack.c.b16 %v1793, %v1788
        %v1844 = vpack.c.b16 %v1799, %v1794
        %v1845 = vpack.c.b16 %v1800, %v1795
        %v1846 = vpack.c.b16 %v1801, %v1796
        %v1847 = vpack.c.b16 %v1802, %v1797
        %v1848 = vpack.c.b16 %v1803, %v1798
        %v1849 = vpack.c.b16 %v1809, %v1804
        %v1850 = vpack.c.b16 %v1810, %v1805
        %v1851 = vpack.c.b16 %v1811, %v1806
        %v1852 = vpack.c.b16 %v1812, %v1807
        %v1853 = vpack.c.b16 %v1813, %v1808
        %v1854 = vpack.c.b16 %v1819, %v1814
        %v1855 = vpack.c.b16 %v1820, %v1815
        %v1856 = vpack.c.b16 %v1821, %v1816
        %v1857 = vpack.c.b16 %v1822, %v1817
        %v1858 = vpack.c.b16 %v1823, %v1818
        %v1859 = vpack.c.b16 %v1829, %v1824
        %v1860 = vpack.c.b16 %v1830, %v1825
        %v1861 = vpack.c.b16 %v1831, %v1826
        %v1862 = vpack.c.b16 %v1832, %v1827
        %v1863 = vpack.c.b16 %v1833, %v1828
        %vm1894 = vcmask 785408
        %v1896 = vsel %vm1894, %v1696, 0
        %v1899 = vsel %vm1894, %v1697, 0
        %v1902 = vsel %vm1894, %v1698, 0
        %v1905 = vsel %vm1894, %v1699, 0
        %v1908 = vsel %vm1894, %v1700, 0
        %v1911 = vsel %vm1894, %v1701, 0
        %1913 = vmatprep.subr.bf16.mxu0 0
        %1914 = vmatpush1.bf16.msra.mxu0 0
        %1915 = vmatprep.subr.bf16.mxu0 0
        %1916 = vmatpush1.bf16.msra.mxu0 0
        %1917 = vmatprep.subr.bf16.mxu0 %v1860
        %1918 = vmatpush1.bf16.msra.mxu0 %v1859
        %1919 = vmatprep.subr.bf16.mxu0 %v1855
        %1920 = vmatpush1.bf16.msra.mxu0 %v1854
        %1921 = vmatprep.subr.bf16.mxu0 %v1850
        %1922 = vmatpush1.bf16.msra.mxu0 %v1849
        %1923 = vmatprep.subr.bf16.mxu0 %v1845
        %1924 = vmatpush1.bf16.msra.mxu0 %v1844
        %1925 = vmatprep.subr.bf16.mxu0 %v1840
        %1926 = vmatpush1.bf16.msra.mxu0 %v1839
        %1927 = vmatprep.subr.bf16.mxu0 %v1835
        %1928 = vmatpush1.bf16.msra.mxu0 %v1834
        %1929 = vmatprep.subr.bf16.mxu0 0
        %1930 = vmatpush2.bf16.msra.mxu0 0
        %1931 = vmatprep.subr.bf16.mxu0 0
        %1932 = vmatpush2.bf16.msra.mxu0 0
        %1933 = vmatprep.subr.bf16.mxu0 0
        %1934 = vmatpush2.bf16.msra.mxu0 0
        %1935 = vmatprep.subr.bf16.mxu0 0
        %1936 = vmatpush2.bf16.msra.mxu0 0
        %1937 = vmatprep.subr.bf16.mxu0 0
        %1938 = vmatpush2.bf16.msra.mxu0 0
        %1939 = vmatprep.subr.bf16.mxu0 0
        %1940 = vmatpush2.bf16.msra.mxu0 0
        %1941 = vmatprep.subr.bf16.mxu0 0
        %1942 = vmatpush2.bf16.msra.mxu0 0
        %1943 = vmatprep.subr.bf16.mxu0 0
        %1944 = vmatpush2.bf16.msra.mxu0 0
        %1945 = vmatprep.mubr.bf16.mxu0 0
        %1946 = vmatmul.mubr.bf16.gmra.mxu0 %v1896
        %v1947 = vpop.f32.mrf.mxu0
        %v1948 = vadd.f32 0.0, %v1947
        %v1949 = vpop.f32.mrf.mxu0
        %v1950 = vpop.f32.mrf.mxu0
        %v1951 = vadd.f32 0.0, %v1950
        %v1952 = vpop.f32.mrf.mxu0
        %v1953 = vadd.f32 0.0, %v1952
        %1954 = vmatprep.mubr.bf16.mxu0 0
        %1955 = vmatmul.mubr.bf16.gmra.mxu0 %v1899
        %v1956 = vpop.f32.mrf.mxu0
        %v1957 = vadd.f32 0.0, %v1956
        %v1958 = vpop.f32.mrf.mxu0
        %v1959 = vadd.f32 0.0, %v1958
        %v1960 = vpop.f32.mrf.mxu0
        %v1961 = vadd.f32 0.0, %v1960
        %v1962 = vpop.f32.mrf.mxu0
        %v1963 = vadd.f32 0.0, %v1962
        %1964 = vmatprep.mubr.bf16.mxu0 0
        %1965 = vmatmul.mubr.bf16.gmra.mxu0 %v1902
        %v1966 = vpop.f32.mrf.mxu0
        %v1967 = vpop.f32.mrf.mxu0
        %v1968 = vadd.f32 0.0, %v1967
        %v1969 = vpop.f32.mrf.mxu0
        %v1970 = vpop.f32.mrf.mxu0
        %1971 = vmatprep.mubr.bf16.mxu0 0
        %1972 = vmatmul.mubr.bf16.gmra.mxu0 %v1905
        %v1973 = vpop.f32.mrf.mxu0
        %v1974 = vadd.f32 0.0, %v1973
        %v1975 = vpop.f32.mrf.mxu0
        %v1976 = vadd.f32 0.0, %v1975
        %v1977 = vpop.f32.mrf.mxu0
        %v1978 = vadd.f32 0.0, %v1977
        %v1979 = vpop.f32.mrf.mxu0
        %v1980 = vadd.f32 0.0, %v1979
        %1981 = vmatprep.mubr.bf16.mxu0 0
        %1982 = vmatmul.mubr.bf16.gmra.mxu0 %v1908
        %v1983 = vpop.f32.mrf.mxu0
        %v1984 = vadd.f32 0.0, %v1983
        %v1985 = vpop.f32.mrf.mxu0
        %v1986 = vadd.f32 0.0, %v1985
        %v1987 = vpop.f32.mrf.mxu0
        %v1988 = vadd.f32 0.0, %v1987
        %v1989 = vpop.f32.mrf.mxu0
        %v1990 = vadd.f32 0.0, %v1989
        %1991 = vmatprep.mubr.bf16.mxu0 0
        %1992 = vmatmul.mubr.bf16.gmra.mxu0 %v1911
        %v1993 = vpop.f32.mrf.mxu0
        %v1994 = vpop.f32.mrf.mxu0
        %v1995 = vpop.f32.mrf.mxu0
        %v1996 = vpop.f32.mrf.mxu0
        %1997 = vdwg.mxu0
        %1998 = vmatprep.subr.bf16.mxu0 0
        %1999 = vmatpush1.bf16.msra.mxu0 0
        %2000 = vmatprep.subr.bf16.mxu0 0
        %2001 = vmatpush1.bf16.msra.mxu0 0
        %2002 = vmatprep.subr.bf16.mxu0 %v1862
        %2003 = vmatpush1.bf16.msra.mxu0 %v1861
        %2004 = vmatprep.subr.bf16.mxu0 %v1857
        %2005 = vmatpush1.bf16.msra.mxu0 %v1856
        %2006 = vmatprep.subr.bf16.mxu0 %v1852
        %2007 = vmatpush1.bf16.msra.mxu0 %v1851
        %2008 = vmatprep.subr.bf16.mxu0 %v1847
        %2009 = vmatpush1.bf16.msra.mxu0 %v1846
        %2010 = vmatprep.subr.bf16.mxu0 %v1842
        %2011 = vmatpush1.bf16.msra.mxu0 %v1841
        %2012 = vmatprep.subr.bf16.mxu0 %v1837
        %2013 = vmatpush1.bf16.msra.mxu0 %v1836
        %2014 = vmatprep.subr.bf16.mxu0 0
        %2015 = vmatpush2.bf16.msra.mxu0 0
        %2016 = vmatprep.subr.bf16.mxu0 0
        %2017 = vmatpush2.bf16.msra.mxu0 0
        %2018 = vmatprep.subr.bf16.mxu0 0
        %2019 = vmatpush2.bf16.msra.mxu0 0
        %2020 = vmatprep.subr.bf16.mxu0 0
        %2021 = vmatpush2.bf16.msra.mxu0 0
        %2022 = vmatprep.subr.bf16.mxu0 0
        %2023 = vmatpush2.bf16.msra.mxu0 0
        %2024 = vmatprep.subr.bf16.mxu0 0
        %2025 = vmatpush2.bf16.msra.mxu0 0
        %2026 = vmatprep.subr.bf16.mxu0 0
        %2027 = vmatpush2.bf16.msra.mxu0 0
        %2028 = vmatprep.subr.bf16.mxu0 0
        %2029 = vmatpush2.bf16.msra.mxu0 0
        %2030 = vmatprep.mubr.bf16.mxu0 0
        %2031 = vmatmul.mubr.bf16.gmra.mxu0 %v1896
        %v2032 = vpop.f32.mrf.mxu0
        %v2033 = vpop.f32.mrf.mxu0
        %v2034 = vpop.f32.mrf.mxu0
        %v2035 = vadd.f32 0.0, %v2034
        %v2036 = vpop.f32.mrf.mxu0
        %2037 = vmatprep.mubr.bf16.mxu0 0
        %2038 = vmatmul.mubr.bf16.gmra.mxu0 %v1899
        %v2039 = vpop.f32.mrf.mxu0
        %v2040 = vadd.f32 0.0, %v2039
        %v2041 = vpop.f32.mrf.mxu0
        %v2042 = vadd.f32 0.0, %v2041
        %v2043 = vpop.f32.mrf.mxu0
        %v2044 = vadd.f32 0.0, %v2043
        %v2045 = vpop.f32.mrf.mxu0
        %v2046 = vadd.f32 0.0, %v2045
        %2047 = vmatprep.mubr.bf16.mxu0 0
        %2048 = vmatmul.mubr.bf16.gmra.mxu0 %v1902
        %v2049 = vpop.f32.mrf.mxu0
        %v2050 = vadd.f32 0.0, %v2049
        %v2051 = vpop.f32.mrf.mxu0
        %v2052 = vadd.f32 0.0, %v2051
        %v2053 = vpop.f32.mrf.mxu0
        %v2054 = vpop.f32.mrf.mxu0
        %v2055 = vadd.f32 0.0, %v2054
        %2056 = vmatprep.mubr.bf16.mxu0 0
        %2057 = vmatmul.mubr.bf16.gmra.mxu0 %v1905
        %v2058 = vpop.f32.mrf.mxu0
        %v2059 = vpop.f32.mrf.mxu0
        %v2060 = vpop.f32.mrf.mxu0
        %v2061 = vadd.f32 0.0, %v2060
        %v2062 = vpop.f32.mrf.mxu0
        %v2063 = vadd.f32 0.0, %v2062
        %2064 = vmatprep.mubr.bf16.mxu0 0
        %2065 = vmatmul.mubr.bf16.gmra.mxu0 %v1908
        %v2066 = vpop.f32.mrf.mxu0
        %v2067 = vadd.f32 0.0, %v2066
        %v2068 = vpop.f32.mrf.mxu0
        %v2069 = vadd.f32 0.0, %v2068
        %v2070 = vpop.f32.mrf.mxu0
        %v2071 = vadd.f32 0.0, %v2070
        %v2072 = vpop.f32.mrf.mxu0
        %v2073 = vadd.f32 0.0, %v2072
        %2074 = vmatprep.mubr.bf16.mxu0 0
        %2075 = vmatmul.mubr.bf16.gmra.mxu0 %v1911
        %v2076 = vpop.f32.mrf.mxu0
        %v2077 = vadd.f32 0.0, %v2076
        %v2078 = vpop.f32.mrf.mxu0
        %v2079 = vadd.f32 0.0, %v2078
        %v2080 = vpop.f32.mrf.mxu0
        %v2081 = vpop.f32.mrf.mxu0
        %2082 = vdwg.mxu0
        %2083 = vmatprep.subr.bf16.mxu0 0
        %2084 = vmatpush1.bf16.msra.mxu0 0
        %2085 = vmatprep.subr.bf16.mxu0 0
        %2086 = vmatpush1.bf16.msra.mxu0 0
        %2087 = vmatprep.subr.bf16.mxu0 0
        %2088 = vmatpush1.bf16.msra.mxu0 %v1863
        %2089 = vmatprep.subr.bf16.mxu0 0
        %2090 = vmatpush1.bf16.msra.mxu0 %v1858
        %2091 = vmatprep.subr.bf16.mxu0 0
        %2092 = vmatpush1.bf16.msra.mxu0 %v1853
        %2093 = vmatprep.subr.bf16.mxu0 0
        %2094 = vmatpush1.bf16.msra.mxu0 %v1848
        %2095 = vmatprep.subr.bf16.mxu0 0
        %2096 = vmatpush1.bf16.msra.mxu0 %v1843
        %2097 = vmatprep.subr.bf16.mxu0 0
        %2098 = vmatpush1.bf16.msra.mxu0 %v1838
        %2099 = vmatprep.subr.bf16.mxu0 0
        %2100 = vmatpush2.bf16.msra.mxu0 0
        %2101 = vmatprep.subr.bf16.mxu0 0
        %2102 = vmatpush2.bf16.msra.mxu0 0
        %2103 = vmatprep.subr.bf16.mxu0 0
        %2104 = vmatpush2.bf16.msra.mxu0 0
        %2105 = vmatprep.subr.bf16.mxu0 0
        %2106 = vmatpush2.bf16.msra.mxu0 0
        %2107 = vmatprep.subr.bf16.mxu0 0
        %2108 = vmatpush2.bf16.msra.mxu0 0
        %2109 = vmatprep.subr.bf16.mxu0 0
        %2110 = vmatpush2.bf16.msra.mxu0 0
        %2111 = vmatprep.subr.bf16.mxu0 0
        %2112 = vmatpush2.bf16.msra.mxu0 0
        %2113 = vmatprep.subr.bf16.mxu0 0
        %2114 = vmatpush2.bf16.msra.mxu0 0
        %2115 = vmatprep.mubr.bf16.mxu0 0
        %2116 = vmatmul.mubr.bf16.gmra.mxu0 %v1896
        %v2117 = vpop.f32.mrf.mxu0
        %v2118 = vpop.f32.mrf.mxu0
        %v2119 = vpop.f32.mrf.mxu0
        %v2120 = vpop.f32.mrf.mxu0
        %2121 = vmatprep.mubr.bf16.mxu0 0
        %2122 = vmatmul.mubr.bf16.gmra.mxu0 %v1899
        %v2123 = vpop.f32.mrf.mxu0
        %v2124 = vadd.f32 0.0, %v2123
        %v2125 = vpop.f32.mrf.mxu0
        %v2126 = vpop.f32.mrf.mxu0
        %v2127 = vadd.f32 0.0, %v2126
        %v2128 = vpop.f32.mrf.mxu0
        %2129 = vmatprep.mubr.bf16.mxu0 0
        %2130 = vmatmul.mubr.bf16.gmra.mxu0 %v1902
        %v2131 = vpop.f32.mrf.mxu0
        %v2132 = vadd.f32 0.0, %v2131
        %v2133 = vpop.f32.mrf.mxu0
        %v2134 = vpop.f32.mrf.mxu0
        %v2135 = vadd.f32 0.0, %v2134
        %v2136 = vpop.f32.mrf.mxu0
        %2137 = vmatprep.mubr.bf16.mxu0 0
        %2138 = vmatmul.mubr.bf16.gmra.mxu0 %v1905
        %v2139 = vpop.f32.mrf.mxu0
        %v2140 = vpop.f32.mrf.mxu0
        %v2141 = vpop.f32.mrf.mxu0
        %v2142 = vpop.f32.mrf.mxu0
        %2143 = vmatprep.mubr.bf16.mxu0 0
        %2144 = vmatmul.mubr.bf16.gmra.mxu0 %v1908
        %v2145 = vpop.f32.mrf.mxu0
        %v2146 = vadd.f32 0.0, %v2145
        %v2147 = vpop.f32.mrf.mxu0
        %v2148 = vpop.f32.mrf.mxu0
        %v2149 = vadd.f32 0.0, %v2148
        %v2150 = vpop.f32.mrf.mxu0
        %2151 = vmatprep.mubr.bf16.mxu0 0
        %2152 = vmatmul.mubr.bf16.gmra.mxu0 %v1911
        %v2153 = vpop.f32.mrf.mxu0
        %v2154 = vadd.f32 0.0, %v2153
        %v2155 = vpop.f32.mrf.mxu0
        %v2156 = vpop.f32.mrf.mxu0
        %v2157 = vadd.f32 0.0, %v2156
        %v2158 = vpop.f32.mrf.mxu0
        %2159 = vdwg.mxu0
        %v2160 = vadd.f32 %v1948, %v1976
        %v2161 = vadd.f32 %v1951, %v1980
        %v2162 = vadd.f32 %v1957, %v1986
        %v2163 = vadd.f32 %v1961, %v1990
        %v2164 = vadd.f32 %v2160, %v2035
        %v2165 = vadd.f32 %v2161, %v2040
        %v2166 = vadd.f32 %v2162, %v2044
        %v2167 = vadd.f32 %v2163, %v2050
        %v2168 = vadd.f32 %v2164, %v2063
        %v2169 = vadd.f32 %v2165, %v2069
        %v2170 = vadd.f32 %v2166, %v2073
        %v2171 = vadd.f32 %v2167, %v2079
        %v2172 = vadd.f32 %v2168, %v2124
        %v2173 = vadd.f32 %v2169, %v2127
        %v2174 = vadd.f32 %v2170, %v2132
        %v2175 = vadd.f32 %v2171, %v2135
        %v2176 = vadd.f32 %v1974, %v1953
        %v2177 = vadd.f32 %v1978, %v1959
        %v2178 = vadd.f32 %v1984, %v1963
        %v2179 = vadd.f32 %v1988, %v1968
        %v2180 = vadd.f32 %v2176, %v2061
        %v2181 = vadd.f32 %v2177, %v2067
        %v2182 = vadd.f32 %v2178, %v2071
        %v2183 = vadd.f32 %v2179, %v2077
        %v2184 = vadd.f32 %v2180, %v2042
        %v2185 = vadd.f32 %v2181, %v2046
        %v2186 = vadd.f32 %v2182, %v2052
        %v2187 = vadd.f32 %v2183, %v2055
        %v2188 = vadd.f32 %v2184, %v2146
        %v2189 = vadd.f32 %v2185, %v2149
        %v2190 = vadd.f32 %v2186, %v2154
        %v2191 = vadd.f32 %v2187, %v2157
        %2196 = vrot.lane.b32.xlu0 %v2172, 64
        %v2197 = vpop.permute.xlu0 %2196
        %2198 = vrot.lane.b32.xlu0 %v2173, 64
        %v2199 = vpop.permute.xlu0 %2198
        %2200 = vrot.lane.b32.xlu0 %v2174, 64
        %v2201 = vpop.permute.xlu0 %2200
        %2202 = vrot.lane.b32.xlu0 %v2175, 64
        %v2203 = vpop.permute.xlu0 %2202
        %v2208 = vmax.f32 %v2172, %v2197
        %v2209 = vmax.f32 %v2173, %v2199
        %v2210 = vmax.f32 %v2174, %v2201
        %v2211 = vmax.f32 %v2175, %v2203
        %2216 = vrot.lane.b32.xlu0 %v2188, 64
        %v2217 = vpop.permute.xlu0 %2216
        %2218 = vrot.lane.b32.xlu0 %v2189, 64
        %v2219 = vpop.permute.xlu0 %2218
        %2220 = vrot.lane.b32.xlu0 %v2190, 64
        %v2221 = vpop.permute.xlu0 %2220
        %2222 = vrot.lane.b32.xlu0 %v2191, 64
        %v2223 = vpop.permute.xlu0 %2222
        %v2228 = vmax.f32 %v2188, %v2217
        %v2229 = vmax.f32 %v2189, %v2219
        %v2230 = vmax.f32 %v2190, %v2221
        %v2231 = vmax.f32 %v2191, %v2223
        %v2232 = vmax.f32 %v2208, %v2228
        %v2233 = vmax.f32 %v2209, %v2229
        %v2234 = vmax.f32 %v2210, %v2230
        %v2235 = vmax.f32 %v2211, %v2231
        %v2236 = vld [vmem:[%s4] sm:$0x1]
        %v2238 = vlaneseq
        %v2239 = vshrl.u32 %v2238, 7
        %v2240 = vsub.s32 0, %v2239
        %v2241 = vrot.slane %v2236, %v2240
        %v2243 = vadd.f32 %v2232, %v2241
        %v2244 = vadd.f32 %v2233, %v2241
        %v2245 = vadd.f32 %v2234, %v2241
        %v2246 = vadd.f32 %v2235, %v2241
        %v2247 = vmax.f32 %v2243, 0.0
        %v2248 = vmax.f32 %v2244, 0.0
        %v2249 = vmax.f32 %v2245, 0.0
        %v2250 = vmax.f32 %v2246, 0.0
        %v2251 = vpack.c.bf16 %v2247, %v2247
        %v2252 = vld [vmem:[%s5] sm:$0xf]
        %v2253 = vld [vmem:[%s5 + $0x4] sm:$0xf]
        %v2254 = vld [vmem:[%s5 + $0x8] sm:$0xf]
        %v2255 = vld [vmem:[%s5 + $0xc] sm:$0xf]
        %v2256 = vld [vmem:[%s5 + $0x10] sm:$0xf]
        %v2257 = vld [vmem:[%s5 + $0x14] sm:$0xf]
        %v2258 = vld [vmem:[%s5 + $0x18] sm:$0xf]
        %v2259 = vld [vmem:[%s5 + $0x1c] sm:$0xf]
        %v2260 = vpack.c.bf16 %v2248, %v2248
        %v2261 = vld [vmem:[%s5 + $0x20] sm:$0xf]
        %v2262 = vld [vmem:[%s5 + $0x24] sm:$0xf]
        %v2263 = vld [vmem:[%s5 + $0x28] sm:$0xf]
        %v2264 = vld [vmem:[%s5 + $0x2c] sm:$0xf]
        %v2265 = vld [vmem:[%s5 + $0x30] sm:$0xf]
        %v2266 = vld [vmem:[%s5 + $0x34] sm:$0xf]
        %v2267 = vld [vmem:[%s5 + $0x38] sm:$0xf]
        %v2268 = vld [vmem:[%s5 + $0x3c] sm:$0xf]
        %v2277 = vunpack.c.l.b16 %v2261
        %v2278 = vunpack.c.l.b16 %v2262
        %v2279 = vunpack.c.l.b16 %v2263
        %v2280 = vunpack.c.l.b16 %v2264
        %v2281 = vunpack.c.l.b16 %v2265
        %v2282 = vunpack.c.l.b16 %v2266
        %v2283 = vunpack.c.l.b16 %v2267
        %v2284 = vunpack.c.l.b16 %v2268
        %v2285 = vpack.c.b16 %v2278, %v2277
        %v2286 = vpack.c.b16 %v2280, %v2279
        %v2287 = vpack.c.b16 %v2282, %v2281
        %v2288 = vpack.c.b16 %v2284, %v2283
        %vm2293 = vcmask 523264
        %v2295 = vsel %vm2293, %v2260, 0
        %2297 = vmatprep.subr.bf16.mxu0 0
        %2298 = vmatpush1.bf16.msra.mxu0 0
        %2299 = vmatprep.subr.bf16.mxu0 0
        %2300 = vmatpush1.bf16.msra.mxu0 0
        %2301 = vmatprep.subr.bf16.mxu0 0
        %2302 = vmatpush1.bf16.msra.mxu0 0
        %2303 = vmatprep.subr.bf16.mxu0 0
        %2304 = vmatpush1.bf16.msra.mxu0 0
        %2305 = vmatprep.subr.bf16.mxu0 0
        %2306 = vmatpush1.bf16.msra.mxu0 %v2288
        %2307 = vmatprep.subr.bf16.mxu0 0
        %2308 = vmatpush1.bf16.msra.mxu0 %v2287
        %2309 = vmatprep.subr.bf16.mxu0 0
        %2310 = vmatpush1.bf16.msra.mxu0 %v2286
        %2311 = vmatprep.subr.bf16.mxu0 0
        %2312 = vmatpush1.bf16.msra.mxu0 %v2285
        %2313 = vmatprep.subr.bf16.mxu0 0
        %2314 = vmatpush2.bf16.msra.mxu0 0
        %2315 = vmatprep.subr.bf16.mxu0 0
        %2316 = vmatpush2.bf16.msra.mxu0 0
        %2317 = vmatprep.subr.bf16.mxu0 0
        %2318 = vmatpush2.bf16.msra.mxu0 0
        %2319 = vmatprep.subr.bf16.mxu0 0
        %2320 = vmatpush2.bf16.msra.mxu0 0
        %2321 = vmatprep.subr.bf16.mxu0 0
        %2322 = vmatpush2.bf16.msra.mxu0 0
        %2323 = vmatprep.subr.bf16.mxu0 0
        %2324 = vmatpush2.bf16.msra.mxu0 0
        %2325 = vmatprep.subr.bf16.mxu0 0
        %2326 = vmatpush2.bf16.msra.mxu0 0
        %2327 = vmatprep.subr.bf16.mxu0 0
        %2328 = vmatpush2.bf16.msra.mxu0 0
        %2329 = vmatprep.mubr.bf16.mxu0 0
        %2330 = vmatmul.mubr.bf16.gmra.mxu0 %v2295
        %v2331 = vpop.f32.mrf.mxu0
        %v2332 = vadd.f32 0.0, %v2331
        %v2333 = vpop.f32.mrf.mxu0
        %v2334 = vpop.f32.mrf.mxu0
        %v2335 = vpop.f32.mrf.mxu0
        %2336 = vdwg.mxu0
        %v2345 = vunpack.c.l.b16 %v2252
        %v2346 = vunpack.c.l.b16 %v2253
        %v2347 = vunpack.c.l.b16 %v2254
        %v2348 = vunpack.c.l.b16 %v2255
        %v2349 = vunpack.c.l.b16 %v2256
        %v2350 = vunpack.c.l.b16 %v2257
        %v2351 = vunpack.c.l.b16 %v2258
        %v2352 = vunpack.c.l.b16 %v2259
        %v2353 = vpack.c.b16 %v2346, %v2345
        %v2354 = vpack.c.b16 %v2348, %v2347
        %v2355 = vpack.c.b16 %v2350, %v2349
        %v2356 = vpack.c.b16 %v2352, %v2351
        %v2362 = vsel %vm2293, %v2251, 0
        %2364 = vmatprep.subr.bf16.mxu0 0
        %2365 = vmatpush1.bf16.msra.mxu0 0
        %2366 = vmatprep.subr.bf16.mxu0 0
        %2367 = vmatpush1.bf16.msra.mxu0 0
        %2368 = vmatprep.subr.bf16.mxu0 0
        %2369 = vmatpush1.bf16.msra.mxu0 0
        %2370 = vmatprep.subr.bf16.mxu0 0
        %2371 = vmatpush1.bf16.msra.mxu0 0
        %2372 = vmatprep.subr.bf16.mxu0 0
        %2373 = vmatpush1.bf16.msra.mxu0 %v2356
        %2374 = vmatprep.subr.bf16.mxu0 0
        %2375 = vmatpush1.bf16.msra.mxu0 %v2355
        %2376 = vmatprep.subr.bf16.mxu0 0
        %2377 = vmatpush1.bf16.msra.mxu0 %v2354
        %2378 = vmatprep.subr.bf16.mxu0 0
        %2379 = vmatpush1.bf16.msra.mxu0 %v2353
        %2380 = vmatprep.subr.bf16.mxu0 0
        %2381 = vmatpush2.bf16.msra.mxu0 0
        %2382 = vmatprep.subr.bf16.mxu0 0
        %2383 = vmatpush2.bf16.msra.mxu0 0
        %2384 = vmatprep.subr.bf16.mxu0 0
        %2385 = vmatpush2.bf16.msra.mxu0 0
        %2386 = vmatprep.subr.bf16.mxu0 0
        %2387 = vmatpush2.bf16.msra.mxu0 0
        %2388 = vmatprep.subr.bf16.mxu0 0
        %2389 = vmatpush2.bf16.msra.mxu0 0
        %2390 = vmatprep.subr.bf16.mxu0 0
        %2391 = vmatpush2.bf16.msra.mxu0 0
        %2392 = vmatprep.subr.bf16.mxu0 0
        %2393 = vmatpush2.bf16.msra.mxu0 0
        %2394 = vmatprep.subr.bf16.mxu0 0
        %2395 = vmatpush2.bf16.msra.mxu0 0
        %2396 = vmatprep.mubr.bf16.mxu0 0
        %2397 = vmatmul.mubr.bf16.gmra.mxu0 %v2362
        %v2398 = vpop.f32.mrf.mxu0
        %v2399 = vadd.f32 %v2332, %v2398
        %v2400 = vpop.f32.mrf.mxu0
        %v2401 = vpop.f32.mrf.mxu0
        %v2402 = vpop.f32.mrf.mxu0
        %2403 = vdwg.mxu0
        %v2404 = vpack.c.bf16 %v2249, %v2249
        %v2405 = vld [vmem:[%s5 + $0x40] sm:$0xf]
        %v2406 = vld [vmem:[%s5 + $0x44] sm:$0xf]
        %v2407 = vld [vmem:[%s5 + $0x48] sm:$0xf]
        %v2408 = vld [vmem:[%s5 + $0x4c] sm:$0xf]
        %v2409 = vld [vmem:[%s5 + $0x50] sm:$0xf]
        %v2410 = vld [vmem:[%s5 + $0x54] sm:$0xf]
        %v2411 = vld [vmem:[%s5 + $0x58] sm:$0xf]
        %v2412 = vld [vmem:[%s5 + $0x5c] sm:$0xf]
        %v2421 = vunpack.c.l.b16 %v2405
        %v2422 = vunpack.c.l.b16 %v2406
        %v2423 = vunpack.c.l.b16 %v2407
        %v2424 = vunpack.c.l.b16 %v2408
        %v2425 = vunpack.c.l.b16 %v2409
        %v2426 = vunpack.c.l.b16 %v2410
        %v2427 = vunpack.c.l.b16 %v2411
        %v2428 = vunpack.c.l.b16 %v2412
        %v2429 = vpack.c.b16 %v2422, %v2421
        %v2430 = vpack.c.b16 %v2424, %v2423
        %v2431 = vpack.c.b16 %v2426, %v2425
        %v2432 = vpack.c.b16 %v2428, %v2427
        %v2438 = vsel %vm2293, %v2404, 0
        %2440 = vmatprep.subr.bf16.mxu0 0
        %2441 = vmatpush1.bf16.msra.mxu0 0
        %2442 = vmatprep.subr.bf16.mxu0 0
        %2443 = vmatpush1.bf16.msra.mxu0 0
        %2444 = vmatprep.subr.bf16.mxu0 0
        %2445 = vmatpush1.bf16.msra.mxu0 0
        %2446 = vmatprep.subr.bf16.mxu0 0
        %2447 = vmatpush1.bf16.msra.mxu0 0
        %2448 = vmatprep.subr.bf16.mxu0 0
        %2449 = vmatpush1.bf16.msra.mxu0 %v2432
        %2450 = vmatprep.subr.bf16.mxu0 0
        %2451 = vmatpush1.bf16.msra.mxu0 %v2431
        %2452 = vmatprep.subr.bf16.mxu0 0
        %2453 = vmatpush1.bf16.msra.mxu0 %v2430
        %2454 = vmatprep.subr.bf16.mxu0 0
        %2455 = vmatpush1.bf16.msra.mxu0 %v2429
        %2456 = vmatprep.subr.bf16.mxu0 0
        %2457 = vmatpush2.bf16.msra.mxu0 0
        %2458 = vmatprep.subr.bf16.mxu0 0
        %2459 = vmatpush2.bf16.msra.mxu0 0
        %2460 = vmatprep.subr.bf16.mxu0 0
        %2461 = vmatpush2.bf16.msra.mxu0 0
        %2462 = vmatprep.subr.bf16.mxu0 0
        %2463 = vmatpush2.bf16.msra.mxu0 0
        %2464 = vmatprep.subr.bf16.mxu0 0
        %2465 = vmatpush2.bf16.msra.mxu0 0
        %2466 = vmatprep.subr.bf16.mxu0 0
        %2467 = vmatpush2.bf16.msra.mxu0 0
        %2468 = vmatprep.subr.bf16.mxu0 0
        %2469 = vmatpush2.bf16.msra.mxu0 0
        %2470 = vmatprep.subr.bf16.mxu0 0
        %2471 = vmatpush2.bf16.msra.mxu0 0
        %2472 = vmatprep.mubr.bf16.mxu0 0
        %2473 = vmatmul.mubr.bf16.gmra.mxu0 %v2438
        %v2474 = vpop.f32.mrf.mxu0
        %v2475 = vadd.f32 0.0, %v2474
        %v2476 = vpop.f32.mrf.mxu0
        %v2477 = vpop.f32.mrf.mxu0
        %v2478 = vpop.f32.mrf.mxu0
        %2479 = vdwg.mxu0
        %v2480 = vadd.f32 %v2399, %v2475
        %v2481 = vpack.c.bf16 %v2250, %v2250
        %v2482 = vld [vmem:[%s5 + $0x60] sm:$0xf]
        %v2483 = vld [vmem:[%s5 + $0x64] sm:$0xf]
        %v2484 = vld [vmem:[%s5 + $0x68] sm:$0xf]
        %v2485 = vld [vmem:[%s5 + $0x6c] sm:$0xf]
        %v2486 = vld [vmem:[%s5 + $0x70] sm:$0xf]
        %v2487 = vld [vmem:[%s5 + $0x74] sm:$0xf]
        %v2488 = vld [vmem:[%s5 + $0x78] sm:$0xf]
        %v2489 = vld [vmem:[%s5 + $0x7c] sm:$0xf]
        %v2498 = vunpack.c.l.b16 %v2482
        %v2499 = vunpack.c.l.b16 %v2483
        %v2500 = vunpack.c.l.b16 %v2484
        %v2501 = vunpack.c.l.b16 %v2485
        %v2502 = vunpack.c.l.b16 %v2486
        %v2503 = vunpack.c.l.b16 %v2487
        %v2504 = vunpack.c.l.b16 %v2488
        %v2505 = vunpack.c.l.b16 %v2489
        %v2506 = vpack.c.b16 %v2499, %v2498
        %v2507 = vpack.c.b16 %v2501, %v2500
        %v2508 = vpack.c.b16 %v2503, %v2502
        %v2509 = vpack.c.b16 %v2505, %v2504
        %v2515 = vsel %vm2293, %v2481, 0
        %2517 = vmatprep.subr.bf16.mxu0 0
        %2518 = vmatpush1.bf16.msra.mxu0 0
        %2519 = vmatprep.subr.bf16.mxu0 0
        %2520 = vmatpush1.bf16.msra.mxu0 0
        %2521 = vmatprep.subr.bf16.mxu0 0
        %2522 = vmatpush1.bf16.msra.mxu0 0
        %2523 = vmatprep.subr.bf16.mxu0 0
        %2524 = vmatpush1.bf16.msra.mxu0 0
        %2525 = vmatprep.subr.bf16.mxu0 0
        %2526 = vmatpush1.bf16.msra.mxu0 %v2509
        %2527 = vmatprep.subr.bf16.mxu0 0
        %2528 = vmatpush1.bf16.msra.mxu0 %v2508
        %2529 = vmatprep.subr.bf16.mxu0 0
        %2530 = vmatpush1.bf16.msra.mxu0 %v2507
        %2531 = vmatprep.subr.bf16.mxu0 0
        %2532 = vmatpush1.bf16.msra.mxu0 %v2506
        %2533 = vmatprep.subr.bf16.mxu0 0
        %2534 = vmatpush2.bf16.msra.mxu0 0
        %2535 = vmatprep.subr.bf16.mxu0 0
        %2536 = vmatpush2.bf16.msra.mxu0 0
        %2537 = vmatprep.subr.bf16.mxu0 0
        %2538 = vmatpush2.bf16.msra.mxu0 0
        %2539 = vmatprep.subr.bf16.mxu0 0
        %2540 = vmatpush2.bf16.msra.mxu0 0
        %2541 = vmatprep.subr.bf16.mxu0 0
        %2542 = vmatpush2.bf16.msra.mxu0 0
        %2543 = vmatprep.subr.bf16.mxu0 0
        %2544 = vmatpush2.bf16.msra.mxu0 0
        %2545 = vmatprep.subr.bf16.mxu0 0
        %2546 = vmatpush2.bf16.msra.mxu0 0
        %2547 = vmatprep.subr.bf16.mxu0 0
        %2548 = vmatpush2.bf16.msra.mxu0 0
        %2549 = vmatprep.mubr.bf16.mxu0 0
        %2550 = vmatmul.mubr.bf16.gmra.mxu0 %v2515
        %v2551 = vpop.f32.mrf.mxu0
        %v2552 = vadd.f32 0.0, %v2551
        %v2553 = vpop.f32.mrf.mxu0
        %v2554 = vpop.f32.mrf.mxu0
        %v2555 = vpop.f32.mrf.mxu0
        %2556 = vdwg.mxu0
        %v2557 = vadd.f32 %v2480, %v2552
        %v2558 = vld [vmem:[%s6] sm:$0x1]
        %v2560 = vlaneseq
        %v2561 = vshrl.u32 %v2560, 7
        %v2562 = vsub.s32 0, %v2561
        %v2563 = vrot.slane %v2558, %v2562
        %v2565 = vadd.f32 %v2557, %v2563
        %v2566 = vmax.f32 %v2565, 0.0
        %v2567 = vpack.c.bf16 %v2566, %v2566
        %v2568 = vld [vmem:[%s7] sm:$0xf]
        %v2569 = vld [vmem:[%s7 + $0x4] sm:$0xf]
        %v2570 = vld [vmem:[%s7 + $0x8] sm:$0xf]
        %v2571 = vld [vmem:[%s7 + $0xc] sm:$0xf]
        %v2572 = vld [vmem:[%s7 + $0x10] sm:$0xf]
        %v2573 = vld [vmem:[%s7 + $0x14] sm:$0xf]
        %v2574 = vld [vmem:[%s7 + $0x18] sm:$0xf]
        %v2575 = vld [vmem:[%s7 + $0x1c] sm:$0xf]
        %v2576 = vld [vmem:[%s7 + $0x20] sm:$0xf]
        %v2577 = vld [vmem:[%s7 + $0x24] sm:$0xf]
        %v2578 = vld [vmem:[%s7 + $0x28] sm:$0xf]
        %v2579 = vld [vmem:[%s7 + $0x2c] sm:$0xf]
        %v2580 = vld [vmem:[%s7 + $0x30] sm:$0xf]
        %v2581 = vld [vmem:[%s7 + $0x34] sm:$0xf]
        %v2582 = vld [vmem:[%s7 + $0x38] sm:$0xf]
        %v2583 = vld [vmem:[%s7 + $0x3c] sm:$0xf]
        %v2584 = vld [vmem:[%s8] sm:$0x1]
        %v2586 = vlaneseq
        %v2587 = vshrl.u32 %v2586, 7
        %v2588 = vsub.s32 0, %v2587
        %v2589 = vrot.slane %v2584, %v2588
        %v2607 = vunpack.c.l.b16 %v2568
        %v2608 = vunpack.c.l.b16 %v2569
        %v2609 = vunpack.c.l.b16 %v2570
        %v2610 = vunpack.c.l.b16 %v2571
        %v2611 = vunpack.c.l.b16 %v2572
        %v2612 = vunpack.c.l.b16 %v2573
        %v2613 = vunpack.c.l.b16 %v2574
        %v2614 = vunpack.c.l.b16 %v2575
        %v2615 = vunpack.c.l.b16 %v2576
        %v2616 = vunpack.c.l.b16 %v2577
        %v2617 = vunpack.c.l.b16 %v2578
        %v2618 = vunpack.c.l.b16 %v2579
        %v2619 = vunpack.c.l.b16 %v2580
        %v2620 = vunpack.c.l.b16 %v2581
        %v2621 = vunpack.c.l.b16 %v2582
        %v2622 = vunpack.c.l.b16 %v2583
        %v2623 = vpack.c.b16 %v2608, %v2607
        %v2624 = vpack.c.b16 %v2610, %v2609
        %v2625 = vpack.c.b16 %v2612, %v2611
        %v2626 = vpack.c.b16 %v2614, %v2613
        %v2627 = vpack.c.b16 %v2616, %v2615
        %v2628 = vpack.c.b16 %v2618, %v2617
        %v2629 = vpack.c.b16 %v2620, %v2619
        %v2630 = vpack.c.b16 %v2622, %v2621
        %2639 = vmatprep.subr.bf16.mxu0 0
        %2640 = vmatpush1.bf16.msra.mxu0 %v2630
        %2641 = vmatprep.subr.bf16.mxu0 0
        %2642 = vmatpush1.bf16.msra.mxu0 %v2629
        %2643 = vmatprep.subr.bf16.mxu0 0
        %2644 = vmatpush1.bf16.msra.mxu0 %v2628
        %2645 = vmatprep.subr.bf16.mxu0 0
        %2646 = vmatpush1.bf16.msra.mxu0 %v2627
        %2647 = vmatprep.subr.bf16.mxu0 0
        %2648 = vmatpush1.bf16.msra.mxu0 %v2626
        %2649 = vmatprep.subr.bf16.mxu0 0
        %2650 = vmatpush1.bf16.msra.mxu0 %v2625
        %2651 = vmatprep.subr.bf16.mxu0 0
        %2652 = vmatpush1.bf16.msra.mxu0 %v2624
        %2653 = vmatprep.subr.bf16.mxu0 0
        %2654 = vmatpush1.bf16.msra.mxu0 %v2623
        %2655 = vmatprep.subr.bf16.mxu0 0
        %2656 = vmatpush2.bf16.msra.mxu0 0
        %2657 = vmatprep.subr.bf16.mxu0 0
        %2658 = vmatpush2.bf16.msra.mxu0 0
        %2659 = vmatprep.subr.bf16.mxu0 0
        %2660 = vmatpush2.bf16.msra.mxu0 0
        %2661 = vmatprep.subr.bf16.mxu0 0
        %2662 = vmatpush2.bf16.msra.mxu0 0
        %2663 = vmatprep.subr.bf16.mxu0 0
        %2664 = vmatpush2.bf16.msra.mxu0 0
        %2665 = vmatprep.subr.bf16.mxu0 0
        %2666 = vmatpush2.bf16.msra.mxu0 0
        %2667 = vmatprep.subr.bf16.mxu0 0
        %2668 = vmatpush2.bf16.msra.mxu0 0
        %2669 = vmatprep.subr.bf16.mxu0 0
        %2670 = vmatpush2.bf16.msra.mxu0 0
        %2671 = vmatprep.mubr.bf16.mxu0 0
        %2672 = vmatmul.mubr.bf16.gmra.mxu0 %v2567
        %v2673 = vpop.f32.mrf.mxu0
        %v2674 = vadd.f32 %v2589, %v2673
        %v2675 = vpop.f32.mrf.mxu0
        %v2676 = vpop.f32.mrf.mxu0
        %v2677 = vpop.f32.mrf.mxu0
        %2678 = vdwg.mxu0
        %v2679 = vmax.f32 %v2674, 0.0
        %v2680 = vpack.c.bf16 %v2679, %v2679
        %v2681 = vld [vmem:[%s9] sm:$0xf]
        %v2682 = vld [vmem:[%s9 + $0x4] sm:$0xf]
        %v2683 = vld [vmem:[%s9 + $0x8] sm:$0xf]
        %v2684 = vld [vmem:[%s9 + $0xc] sm:$0xf]
        %v2685 = vld [vmem:[%s9 + $0x10] sm:$0xf]
        %v2686 = vld [vmem:[%s9 + $0x14] sm:$0xf]
        %v2687 = vld [vmem:[%s9 + $0x18] sm:$0xf]
        %v2688 = vld [vmem:[%s9 + $0x1c] sm:$0xf]
        %v2689 = vld [vmem:[%s9 + $0x20] sm:$0xf]
        %v2690 = vld [vmem:[%s9 + $0x24] sm:$0xf]
        %v2691 = vld [vmem:[%s9 + $0x28] sm:$0xf]
        %v2692 = vld [vmem:[%s9 + $0x2c] sm:$0xf]
        %v2693 = vld [vmem:[%s9 + $0x30] sm:$0xf]
        %v2694 = vld [vmem:[%s9 + $0x34] sm:$0xf]
        %v2695 = vld [vmem:[%s9 + $0x38] sm:$0xf]
        %v2696 = vld [vmem:[%s9 + $0x3c] sm:$0xf]
        %v2697 = vld [vmem:[%s10] sm:$0x1]
        %v2699 = vlaneseq
        %v2700 = vshrl.u32 %v2699, 7
        %v2701 = vsub.s32 0, %v2700
        %v2702 = vrot.slane %v2697, %v2701
        %v2720 = vunpack.c.l.b16 %v2681
        %v2721 = vunpack.c.l.b16 %v2682
        %v2722 = vunpack.c.l.b16 %v2683
        %v2723 = vunpack.c.l.b16 %v2684
        %v2724 = vunpack.c.l.b16 %v2685
        %v2725 = vunpack.c.l.b16 %v2686
        %v2726 = vunpack.c.l.b16 %v2687
        %v2727 = vunpack.c.l.b16 %v2688
        %v2728 = vunpack.c.l.b16 %v2689
        %v2729 = vunpack.c.l.b16 %v2690
        %v2730 = vunpack.c.l.b16 %v2691
        %v2731 = vunpack.c.l.b16 %v2692
        %v2732 = vunpack.c.l.b16 %v2693
        %v2733 = vunpack.c.l.b16 %v2694
        %v2734 = vunpack.c.l.b16 %v2695
        %v2735 = vunpack.c.l.b16 %v2696
        %v2736 = vpack.c.b16 %v2721, %v2720
        %v2737 = vpack.c.b16 %v2723, %v2722
        %v2738 = vpack.c.b16 %v2725, %v2724
        %v2739 = vpack.c.b16 %v2727, %v2726
        %v2740 = vpack.c.b16 %v2729, %v2728
        %v2741 = vpack.c.b16 %v2731, %v2730
        %v2742 = vpack.c.b16 %v2733, %v2732
        %v2743 = vpack.c.b16 %v2735, %v2734
        %2752 = vmatprep.subr.bf16.mxu0 0
        %2753 = vmatpush1.bf16.msra.mxu0 %v2743
        %2754 = vmatprep.subr.bf16.mxu0 0
        %2755 = vmatpush1.bf16.msra.mxu0 %v2742
        %2756 = vmatprep.subr.bf16.mxu0 0
        %2757 = vmatpush1.bf16.msra.mxu0 %v2741
        %2758 = vmatprep.subr.bf16.mxu0 0
        %2759 = vmatpush1.bf16.msra.mxu0 %v2740
        %2760 = vmatprep.subr.bf16.mxu0 0
        %2761 = vmatpush1.bf16.msra.mxu0 %v2739
        %2762 = vmatprep.subr.bf16.mxu0 0
        %2763 = vmatpush1.bf16.msra.mxu0 %v2738
        %2764 = vmatprep.subr.bf16.mxu0 0
        %2765 = vmatpush1.bf16.msra.mxu0 %v2737
        %2766 = vmatprep.subr.bf16.mxu0 0
        %2767 = vmatpush1.bf16.msra.mxu0 %v2736
        %2768 = vmatprep.subr.bf16.mxu0 0
        %2769 = vmatpush2.bf16.msra.mxu0 0
        %2770 = vmatprep.subr.bf16.mxu0 0
        %2771 = vmatpush2.bf16.msra.mxu0 0
        %2772 = vmatprep.subr.bf16.mxu0 0
        %2773 = vmatpush2.bf16.msra.mxu0 0
        %2774 = vmatprep.subr.bf16.mxu0 0
        %2775 = vmatpush2.bf16.msra.mxu0 0
        %2776 = vmatprep.subr.bf16.mxu0 0
        %2777 = vmatpush2.bf16.msra.mxu0 0
        %2778 = vmatprep.subr.bf16.mxu0 0
        %2779 = vmatpush2.bf16.msra.mxu0 0
        %2780 = vmatprep.subr.bf16.mxu0 0
        %2781 = vmatpush2.bf16.msra.mxu0 0
        %2782 = vmatprep.subr.bf16.mxu0 0
        %2783 = vmatpush2.bf16.msra.mxu0 0
        %2784 = vmatprep.mubr.bf16.mxu0 0
        %2785 = vmatmul.mubr.bf16.gmra.mxu0 %v2680
        %v2786 = vpop.f32.mrf.mxu0
        %v2787 = vadd.f32 %v2702, %v2786
        %v2788 = vpop.f32.mrf.mxu0
        %v2789 = vpop.f32.mrf.mxu0
        %v2790 = vpop.f32.mrf.mxu0
        %2791 = vdwg.mxu0
        %2792 = vst [vmem:[%s379] sm:$0xff] %v2787
        %s2793 = sand.u32 %s269, 1
        %s2794 = scalar_lea.sflag [#allocation3], %s2793
        %s2795 = sand.u32 %s269, 1
        %s2796 = smul.addr %s2795, 8
        %s2797 = scalar_lea.vmem [#allocation2], %s2796
        // Predicated region
        $region65: #{cnn_forward.1} parent=63 // pred_check
          %p2798 = pneg %p279
        $region66: #{cnn_forward.1} parent=63 // pred_check_branch
          %2800 = sbr.rel (%p2798) target = $region68
        $region67: #{cnn_forward.1} parent=63 // pred_region
          %s2802 = ssub.s32 128, 128
          %2803 = vsyncadd %s2794, %s2802
          %s2804 = smul.addr %s25, 128
          %s2805 = scalar_lea.hbm %s11, %s2804
          %s2807 = sshll.u32 %s2797, 4
          %s2808 = int_to_ptr.vmem [resolvable:$true] %s2807
          %2810 = dma.vmem_to_hbm [thread:$0]  %s2808, 128, %s2805, %s2794
        $region68: #{cnn_forward.1} parent=63 // pred_fallthru
          _
      $region64: #{cnn_forward.1} parent=5 // pred_fallthru
        _
      %p2811 = scmp.le.s32.totalorder 2, %s20
      // Predicated region
      $region69: #{cnn_forward.1} parent=5 // pred_check
        %p2812 = pneg %p2811
      $region70: #{cnn_forward.1} parent=5 // pred_check_branch
        %2814 = sbr.rel (%p2812) target = $region72
      $region71: #{cnn_forward.1} parent=5 // pred_region
        %s2815 = ssub.s32 %s20, 2
        // Predicated region
        $region73: #{cnn_forward.1} parent=71 // pred_check
          %p2816 = pneg %p285
        $region74: #{cnn_forward.1} parent=71 // pred_check_branch
          %2818 = sbr.rel (%p2816) target = $region76
        $region75: #{cnn_forward.1} parent=71 // pred_region
          %s2819 = sand.u32 %s270, 1
          %s2820 = scalar_lea.sflag [#allocation3], %s2819
          %s2821 = sand.u32 %s270, 1
          %s2822 = smul.addr %s2821, 8
          %s2823 = scalar_lea.vmem [#allocation2], %s2822
          %2824 = dma.done %s2820, 128
        $region76: #{cnn_forward.1} parent=71 // pred_fallthru
          _
      $region72: #{cnn_forward.1} parent=5 // pred_fallthru
        _
    $region6: #{cnn_forward.1} parent=1 // loop_footer
      %s24 = sadd.s32 1, %s20
    $region7: #{cnn_forward.1} parent=1 // loop_footer_branch
      %19 = sbr.rel target = $region3
    $region8: #{cnn_forward.1} parent=1 // loop_exit
      _
    %2825 = vsyncpa [#allocation3], 1
    %s2826 = scalar_lea.sflag [#allocation3], 1
    %2827 = vsyncpa %s2826, 1

</llo_original>
